<compile_context>
chip_gen: v6e
topology: v6e:2x2x1
jax: 0.10.0
libtpu: 0.0.40
codegen_flags: <defaults>
</compile_context>

<pallas_src>
import functools

import jax
import jax.numpy as jnp
from jax import lax
from jax.experimental import pallas as pl
from jax.experimental.pallas import tpu as pltpu

EPS = 1e-5  # torch.nn.BatchNorm2d default


# ---------------------------------------------------------------------------
# Pallas kernel
# ---------------------------------------------------------------------------
def _inception_kernel(x_ref, w_ref, b_ref, o_ref, *, K, stride, pad, H, W,
                      Hout, Wout, Cin, Cout):
    """One batch element, NCHW layout (channels on sublanes, flattened spatial on lanes).

    x_ref : (1, Cin, H, W)        unpadded input (padding done on-chip, no HBM round trip)
    w_ref : (Cout, K*K*Cin)       fully folded weight (KxK*num_branch + scale + skip)
    b_ref : (Cout, 1)             total folded bias
    o_ref : (1, Cout, Hout*Wout)  lane-dense output (spatial on the lane axis)
    """
    x = x_ref[0]  # (Cin, H, W)

    # Zero-pad spatially in VMEM/vregs instead of a wrapper-side jnp.pad HBM pass.
    if pad > 0:
        zw = jnp.zeros((Cin, H, pad), x.dtype)
        x = jnp.concatenate([zw, x, zw], axis=2)            # (Cin, H, W + 2p)
        zh = jnp.zeros((Cin, pad, W + 2 * pad), x.dtype)
        x = jnp.concatenate([zh, x, zh], axis=1)            # (Cin, H + 2p, W + 2p)

    # im2col (transposed): stack the K*K shifted windows along the contraction axis.
    cols = []
    for kh in range(K):
        for kw in range(K):
            patch = lax.slice(
                x,
                (0, kh, kw),
                (Cin, kh + (Hout - 1) * stride + 1, kw + (Wout - 1) * stride + 1),
                (1, stride, stride),
            )                                               # (Cin, Hout, Wout)
            cols.append(patch.reshape(Cin, Hout * Wout))
    col = jnp.concatenate(cols, axis=0)                     # (K*K*Cin, Hout*Wout)

    # Single MXU matmul, f32 accumulation; bias add on the VPU.
    acc = jnp.dot(w_ref[...], col, preferred_element_type=jnp.float32)
    o_ref[0] = (acc + b_ref[...]).astype(o_ref.dtype)       # unmasked lane-dense store


def inception_forward_pallas(x_nchw, w_eff, bias_eff, *, K, stride):
    """x_nchw: (N, Cin, H, W) float32.  Returns (N, Cout, Hout, Wout) float32."""
    N, Cin, H, W = x_nchw.shape
    Cout = w_eff.shape[0]
    p = K // 2
    Hout = (H + 2 * p - K) // stride + 1
    Wout = (W + 2 * p - K) // stride + 1

    kernel = functools.partial(
        _inception_kernel, K=K, stride=stride, pad=p, H=H, W=W,
        Hout=Hout, Wout=Wout, Cin=Cin, Cout=Cout)

    out_flat = pl.pallas_call(
        kernel,
        out_shape=jax.ShapeDtypeStruct((N, Cout, Hout * Wout), jnp.float32),
        grid=(N,),
        in_specs=[
            pl.BlockSpec((1, Cin, H, W), lambda n: (n, 0, 0, 0)),
            pl.BlockSpec((Cout, K * K * Cin), lambda n: (0, 0)),
            pl.BlockSpec((Cout, 1), lambda n: (0, 0)),
        ],
        out_specs=pl.BlockSpec((1, Cout, Hout * Wout), lambda n: (n, 0, 0)),
        compiler_params=pltpu.CompilerParams(dimension_semantics=("parallel",)),
    )(x_nchw, w_eff, bias_eff)

    # Metadata-only reshape back to NCHW (no transpose, no extra HBM pass).
    return out_flat.reshape(N, Cout, Hout, Wout)


# ---------------------------------------------------------------------------
# Parameter setup / BN folding (glue, plain JAX)
# ---------------------------------------------------------------------------
def grouped_to_dense(w, Cin, groups):
    """torch conv weight (Cout, Cin//g, K, K) -> dense (K*K, Cin, Cout) (zeros off-group).

    TODO(synk): for groups > 1 keep the weight block-diagonal (per-group matmuls / group
    grid axis) instead of densifying with zeros; demo uses groups == 1.
    """
    Cout, cin_g, K, _ = w.shape
    cout_g = Cout // groups
    dense = jnp.zeros((K, K, Cin, Cout), jnp.float32)
    for g in range(groups):
        blk = jnp.transpose(w[g * cout_g:(g + 1) * cout_g], (2, 3, 1, 0))  # (K,K,cin_g,cout_g)
        dense = dense.at[:, :, g * cin_g:(g + 1) * cin_g,
                         g * cout_g:(g + 1) * cout_g].set(blk)
    return dense.reshape(K * K, Cin, Cout)


def fold_bn(gamma, beta, mean, var):
    scale = gamma / jnp.sqrt(var + EPS)
    bias = beta - mean * scale
    return scale, bias


def build_effective_params(params, *, Cin, Cout, K, stride, groups, num_branch):
    """Fold every branch into one (Cout, K*K*Cin) weight + (Cout, 1) bias."""
    # Main KxK branch: all num_branch branches share the same module -> scale by num_branch.
    # (Only valid because ModuleList([m]*n) aliases one module; independent weights would
    #  need a per-branch sum here.)
    s3, b3 = fold_bn(*params["bn3"])
    w3 = grouped_to_dense(params["conv3_w"], Cin, groups) * s3[None, None, :]  # (K*K,Cin,Cout)
    w3 = float(num_branch) * w3
    bias = float(num_branch) * b3

    # Pointwise contributions (scale branch 1x1 conv + skip BN as diagonal) folded into
    # the CENTER tap of the KxK weight (valid for odd K with 'same' padding K//2).
    wpw = jnp.zeros((Cin, Cout), jnp.float32)
    if K > 1:  # scale branch: 1x1 conv + BN
        s1, b1 = fold_bn(*params["bn1"])
        w1 = grouped_to_dense(params["conv1_w"], Cin, groups)[0] * s1[None, :]
        wpw = wpw + w1
        bias = bias + b1
    if stride == 1 and Cin == Cout:  # skip branch: BN(x) == diagonal 1x1 conv
        ss, bs = fold_bn(*params["bn_skip"])
        wpw = wpw + jnp.diag(ss)
        bias = bias + bs
    center = (K // 2) * K + (K // 2)
    w3 = w3.at[center].add(wpw)

    # (K*K, Cin, Cout) -> (Cout, K*K*Cin), matching the kernel's im2col row order
    # (row index = tap * Cin + cin).
    w_eff = jnp.transpose(w3, (2, 0, 1)).reshape(Cout, K * K * Cin)
    return w_eff, bias.reshape(Cout, 1)


def init_params(key, *, Cin, Cout, K, groups, has_scale, has_skip):
    ks = list(jax.random.split(key, 16))
    p = {}
    p["conv3_w"] = 0.1 * jax.random.normal(ks[0], (Cout, Cin // groups, K, K), jnp.float32)
    p["bn3"] = (
        1.0 + 0.1 * jax.random.normal(ks[1], (Cout,), jnp.float32),   # gamma
        0.1 * jax.random.normal(ks[2], (Cout,), jnp.float32),         # beta
        0.1 * jax.random.normal(ks[3], (Cout,), jnp.float32),         # running_mean
        0.5 + jax.random.uniform(ks[4], (Cout,), jnp.float32),        # running_var
    )
    if has_scale:
        p["conv1_w"] = 0.1 * jax.random.normal(ks[5], (Cout, Cin // groups, 1, 1), jnp.float32)
        p["bn1"] = (
            1.0 + 0.1 * jax.random.normal(ks[6], (Cout,), jnp.float32),
            0.1 * jax.random.normal(ks[7], (Cout,), jnp.float32),
            0.1 * jax.random.normal(ks[8], (Cout,), jnp.float32),
            0.5 + jax.random.uniform(ks[9], (Cout,), jnp.float32),
        )
    if has_skip:
        p["bn_skip"] = (
            1.0 + 0.1 * jax.random.normal(ks[10], (Cout,), jnp.float32),
            0.1 * jax.random.normal(ks[11], (Cout,), jnp.float32),
            0.1 * jax.random.normal(ks[12], (Cout,), jnp.float32),
            0.5 + jax.random.uniform(ks[13], (Cout,), jnp.float32),
        )
    return p


# ---------------------------------------------------------------------------
# Pure-JAX reference (mirrors the PyTorch eval-mode forward, unfused)
# ---------------------------------------------------------------------------
def reference_forward(x, params, *, K, stride, groups, num_branch, Cin, Cout):
    def bn(y, gb):
        g, b, m, v = gb
        inv = g / jnp.sqrt(v + EPS)
        return (y - m[None, :, None, None]) * inv[None, :, None, None] + b[None, :, None, None]

    def conv(x, w, k, s):
        pad = k // 2
        return lax.conv_general_dilated(
            x, w, (s, s), [(pad, pad), (pad, pad)],
            dimension_numbers=("NCHW", "OIHW", "NCHW"), feature_group_count=groups)

    y = num_branch * bn(conv(x, params["conv3_w"], K, stride), params["bn3"])
    if stride == 1 and Cin == Cout:
        y = y + bn(x, params["bn_skip"])
    if K > 1:
        y = y + bn(conv(x, params["conv1_w"], 1, stride), params["bn1"])
    return y


# ---------------------------------------------------------------------------
if __name__ == "__main__":
    # Module config: InceptionModule(4, 4, kernel=3, stride=1, groups=1, num_branch=2)
    N, Cin, H, W = 2, 4, 16, 16
    Cout, K, stride, groups, num_branch = 4, 3, 1, 1, 2
    has_skip = (stride == 1 and Cin == Cout)
    has_scale = K > 1

    key = jax.random.PRNGKey(0)
    kx, kp = jax.random.split(key)
    x = jax.random.normal(kx, (N, Cin, H, W), jnp.float32)

    params = init_params(kp, Cin=Cin, Cout=Cout, K=K, groups=groups,
                         has_scale=has_scale, has_skip=has_skip)
    w_eff, bias_eff = build_effective_params(
        params, Cin=Cin, Cout=Cout, K=K, stride=stride, groups=groups,
        num_branch=num_branch)

    out = inception_forward_pallas(x, w_eff, bias_eff, K=K, stride=stride)
    out = jax.block_until_ready(out)

    ref = reference_forward(x, params, K=K, stride=stride, groups=groups,
                            num_branch=num_branch, Cin=Cin, Cout=Cout)
    assert out.shape == ref.shape
    assert jnp.allclose(out, ref, atol=1e-4, rtol=1e-4), "mismatch vs reference"

    print("KERNEL_OK")
</pallas_src>

<mosaic_0001>
module attributes {stable_mosaic.version = 11 : i64} {
  func.func @_inception_kernel(%arg0: i32, %arg1: memref<1x4x16x16xf32, #tpu.memory_space<vmem>>, %arg2: memref<4x36xf32, #tpu.memory_space<vmem>>, %arg3: memref<4x1xf32, #tpu.memory_space<vmem>>, %arg4: memref<1x4x256xf32, #tpu.memory_space<vmem>>) attributes {dimension_semantics = [#tpu.dimension_semantics<parallel>], iteration_bounds = array<i64: 2>, scalar_prefetch = 0 : i64, scratch_operands = 0 : i64, tpu.core_type = #tpu.core_type<tc>, window_params = [{transform_indices = @transform_0, window_bounds = array<i64: 1, 4, 16, 16>}, {pipeline_mode = #tpu.pipeline_mode<synchronous>, transform_indices = @transform_1, window_bounds = array<i64: 4, 36>}, {pipeline_mode = #tpu.pipeline_mode<synchronous>, transform_indices = @transform_2, window_bounds = array<i64: 4, 1>}, {transform_indices = @transform_3, window_bounds = array<i64: 1, 4, 256>}]} {
    %c0 = arith.constant 0 : index
    %c0_0 = arith.constant 0 : index
    %c0_1 = arith.constant 0 : index
    %c0_2 = arith.constant 0 : index
    %0 = vector.load %arg1[%c0, %c0_0, %c0_1, %c0_2] : memref<1x4x16x16xf32, #tpu.memory_space<vmem>>, vector<1x4x16x16xf32>
    %1 = vector.shape_cast %0 : vector<1x4x16x16xf32> to vector<4x16x16xf32>
    %cst = arith.constant 0.000000e+00 : f32
    %2 = vector.broadcast %cst : f32 to vector<4x16x1xf32>
    %3 = tpu.concatenate %2, %1, %2 in 2 : vector<4x16x1xf32>, vector<4x16x16xf32>, vector<4x16x1xf32> -> vector<4x16x18xf32>
    %cst_3 = arith.constant 0.000000e+00 : f32
    %4 = vector.broadcast %cst_3 : f32 to vector<4x1x18xf32>
    %5 = tpu.concatenate %4, %3, %4 in 1 : vector<4x1x18xf32>, vector<4x16x18xf32>, vector<4x1x18xf32> -> vector<4x18x18xf32>
    %6 = vector.extract_strided_slice %5 {offsets = [0, 0, 0], sizes = [4, 16, 16], strides = [1, 1, 1]} : vector<4x18x18xf32> to vector<4x16x16xf32>
    %7 = vector.shape_cast %6 : vector<4x16x16xf32> to vector<4x256xf32>
    %8 = vector.extract_strided_slice %5 {offsets = [0, 0, 1], sizes = [4, 16, 16], strides = [1, 1, 1]} : vector<4x18x18xf32> to vector<4x16x16xf32>
    %9 = vector.shape_cast %8 : vector<4x16x16xf32> to vector<4x256xf32>
    %10 = vector.extract_strided_slice %5 {offsets = [0, 0, 2], sizes = [4, 16, 16], strides = [1, 1, 1]} : vector<4x18x18xf32> to vector<4x16x16xf32>
    %11 = vector.shape_cast %10 : vector<4x16x16xf32> to vector<4x256xf32>
    %12 = vector.extract_strided_slice %5 {offsets = [0, 1, 0], sizes = [4, 16, 16], strides = [1, 1, 1]} : vector<4x18x18xf32> to vector<4x16x16xf32>
    %13 = vector.shape_cast %12 : vector<4x16x16xf32> to vector<4x256xf32>
    %14 = vector.extract_strided_slice %5 {offsets = [0, 1, 1], sizes = [4, 16, 16], strides = [1, 1, 1]} : vector<4x18x18xf32> to vector<4x16x16xf32>
    %15 = vector.shape_cast %14 : vector<4x16x16xf32> to vector<4x256xf32>
    %16 = vector.extract_strided_slice %5 {offsets = [0, 1, 2], sizes = [4, 16, 16], strides = [1, 1, 1]} : vector<4x18x18xf32> to vector<4x16x16xf32>
    %17 = vector.shape_cast %16 : vector<4x16x16xf32> to vector<4x256xf32>
    %18 = vector.extract_strided_slice %5 {offsets = [0, 2, 0], sizes = [4, 16, 16], strides = [1, 1, 1]} : vector<4x18x18xf32> to vector<4x16x16xf32>
    %19 = vector.shape_cast %18 : vector<4x16x16xf32> to vector<4x256xf32>
    %20 = vector.extract_strided_slice %5 {offsets = [0, 2, 1], sizes = [4, 16, 16], strides = [1, 1, 1]} : vector<4x18x18xf32> to vector<4x16x16xf32>
    %21 = vector.shape_cast %20 : vector<4x16x16xf32> to vector<4x256xf32>
    %22 = vector.extract_strided_slice %5 {offsets = [0, 2, 2], sizes = [4, 16, 16], strides = [1, 1, 1]} : vector<4x18x18xf32> to vector<4x16x16xf32>
    %23 = vector.shape_cast %22 : vector<4x16x16xf32> to vector<4x256xf32>
    %24 = tpu.concatenate %7, %9, %11, %13, %15, %17, %19, %21, %23 in 0 : vector<4x256xf32>, vector<4x256xf32>, vector<4x256xf32>, vector<4x256xf32>, vector<4x256xf32>, vector<4x256xf32>, vector<4x256xf32>, vector<4x256xf32>, vector<4x256xf32> -> vector<36x256xf32>
    %c0_4 = arith.constant 0 : index
    %c0_5 = arith.constant 0 : index
    %25 = vector.load %arg2[%c0_4, %c0_5] : memref<4x36xf32, #tpu.memory_space<vmem>>, vector<4x36xf32>
    %cst_6 = arith.constant dense<0.000000e+00> : vector<4x256xf32>
    %26 = tpu.matmul %25, %24, %cst_6 {dimension_numbers = #tpu.dot_dimension_numbers<[1], [0], [0], [1], [0, 0, 1, 1], [], []>} : vector<4x36xf32>, vector<36x256xf32>, vector<4x256xf32> -> vector<4x256xf32>
    %c0_7 = arith.constant 0 : index
    %c0_8 = arith.constant 0 : index
    %27 = vector.load %arg3[%c0_7, %c0_8] : memref<4x1xf32, #tpu.memory_space<vmem>>, vector<4x1xf32>
    %28 = vector.broadcast %27 : vector<4x1xf32> to vector<4x256xf32>
    %29 = arith.addf %26, %28 : vector<4x256xf32>
    %c0_9 = arith.constant 0 : index
    %c0_10 = arith.constant 0 : index
    %c0_11 = arith.constant 0 : index
    %30 = vector.load %arg4[%c0_9, %c0_10, %c0_11] : memref<1x4x256xf32, #tpu.memory_space<vmem>>, vector<1x4x256xf32>
    %31 = vector.shape_cast %30 : vector<1x4x256xf32> to vector<4x256xf32>
    %32 = vector.shape_cast %29 : vector<4x256xf32> to vector<1x4x256xf32>
    tpu.vector_store %arg4[%c0_9, %c0_10, %c0_11], %32 {strides = array<i32>} : memref<1x4x256xf32, #tpu.memory_space<vmem>>, vector<1x4x256xf32>,
    return
  }
  func.func @transform_0(%arg0: i32) -> (i32, i32, i32, i32) {
    %c0_i32 = arith.constant 0 : i32
    %c0_i32_0 = arith.constant 0 : i32
    %c0_i32_1 = arith.constant 0 : i32
    %c0_i32_2 = arith.constant 0 : i32
    return %arg0, %c0_i32, %c0_i32_0, %c0_i32_1 : i32, i32, i32, i32
  }
  func.func @transform_1(%arg0: i32) -> (i32, i32) {
    %c0_i32 = arith.constant 0 : i32
    %c0_i32_0 = arith.constant 0 : i32
    %c0_i32_1 = arith.constant 0 : i32
    return %c0_i32, %c0_i32_0 : i32, i32
  }
  func.func @transform_2(%arg0: i32) -> (i32, i32) {
    %c0_i32 = arith.constant 0 : i32
    %c0_i32_0 = arith.constant 0 : i32
    %c0_i32_1 = arith.constant 0 : i32
    return %c0_i32, %c0_i32_0 : i32, i32
  }
  func.func @transform_3(%arg0: i32) -> (i32, i32, i32) {
    %c0_i32 = arith.constant 0 : i32
    %c0_i32_0 = arith.constant 0 : i32
    %c0_i32_1 = arith.constant 0 : i32
    return %arg0, %c0_i32, %c0_i32_0 : i32, i32, i32
  }
}

</mosaic_0001>

<llo_original>
// kernel: tpu_custom_call.1
$region0: #{tpu_custom_call.1}
  #allocation0 [shape = 'u32[]', space=smem, size = 0x4, offset = 0x4, fixed_abs, tag = 'smem constant byte address 0x4 - core index']
  #allocation1 [shape = 'u32[144,128]{1,0:T(1,128)}', space=vmem, size = 0x12000, scoped, tag = 'internal scratch']
  %s0 = inlined_call_operand.hbm [shape: f32[2,4,16,16], index: 0, kind: input, shape index: {}]
  %s1 = inlined_call_operand.vmem [shape: f32[4,36], index: 1, kind: input, shape index: {}]
  %s2 = inlined_call_operand.vmem [shape: f32[4,1], index: 2, kind: input, shape index: {}]
  %s3 = inlined_call_operand.hbm [shape: f32[2,4,256], index: 3, kind: output, shape index: {}]
  %s4 = sld [smem:[#allocation0]]
  $region49: #{tpu_custom_call.1} parent=0
    _
  %s6 = ssub.s32 1, %s4
  %s7 = scalar_select 0, %s6, %s4
  $region1: #{tpu_custom_call.1} parent=0
    #allocation2 [shape = 'u8[65536]{0}', space=vmem, size = 0x10000, scoped, tag = 'input window, operand 0']
    #allocation3 [shape = 's32[2]{0}', space=sflag, size = 0x8, scoped, tag = 'scoped memory for tpu_custom_call.1']
    #allocation4 [shape = 's32[2]{0}', space=sflag, size = 0x8, scoped, tag = 'scoped memory for tpu_custom_call.1']
    #allocation5 [shape = 'u8[8192]{0}', space=vmem, size = 0x2000, scoped, tag = 'output window, operand 0']
    %8 = vsyncpa [#allocation3], 0
    %s9 = scalar_lea.sflag [#allocation3], 1
    %10 = vsyncpa %s9, 0
    %11 = vsyncpa [#allocation4], 0
    %s12 = scalar_lea.sflag [#allocation4], 1
    %13 = vsyncpa %s12, 0
    loop: start=0, step=1, limit=4
    $region2: #{tpu_custom_call.1} parent=1 // loop_pre_header
      _
    $region3: #{tpu_custom_call.1} parent=1 // loop_header
      %s15 = sphi 0, %s19
      %p16 = scmp.ge.s32.totalorder %s15, 4
      %s25 = sphi 0, %s27
      %s28 = sphi 0, %s25
      %s29 = sphi 0, %s28
      %s45 = sphi 0, %s29
      %s49 = sphi 0, %s49
      %s51 = sphi 0, %s49
      %s52 = sphi 0, %s51
      %s66 = sphi 0, %s52
      %s70 = sphi 0, %s70
      %s72 = sphi 0, %s70
      %s73 = sphi 0, %s72
      %s87 = sphi 0, %s73
      %s93 = sphi 0, %s95
      %s96 = sphi 0, %s93
      %s97 = sphi 0, %s96
      %s113 = sphi 0, %s97
    $region4: #{tpu_custom_call.1} parent=1 // loop_header_branch
      %18 = sbr.rel (%p16) target = $region8
    $region5: #{tpu_custom_call.1} parent=1 // loop_body
      %s20 = ssub.s32 %s15, 1
      %s21 = ssub.s32 %s15, 2
      %s22 = sadd.s32 %s15, 1
      %s23 = ssub.s32 %s15, %s22
      %p24 = scmp.eq.s32.totalorder %s23, 0
      %s26 = sadd.s32 %s25, 1
      %s27 = scalar_select %p24, %s25, %s26
      %p30 = pneg %p24
      %p31 = scmp.eq.s32.totalorder %s15, 1
      %p32 = por %p30, %p31
      %p33 = scmp.ne.s32.totalorder %s25, %s28
      %p34 = scmp.eq.s32.totalorder %s15, 0
      %p35 = por %p33, %p34
      %p36 = scmp.ne.s32.totalorder %s25, %s28
      %p37 = scmp.eq.s32.totalorder %s20, 1
      %p38 = por %p36, %p37
      %p39 = scmp.ne.s32.totalorder %s28, %s29
      %p40 = scmp.eq.s32.totalorder %s20, 0
      %p41 = por %p39, %p40
      %p42 = scmp.ne.s32.totalorder %s28, %s29
      %p43 = scmp.eq.s32.totalorder %s21, 1
      %p44 = por %p42, %p43
      %p46 = scmp.ne.s32.totalorder %s29, %s45
      %p47 = scmp.eq.s32.totalorder %s21, 0
      %p48 = por %p46, %p47
      %s50 = sadd.s32 %s49, 1
      %p53 = scmp.eq.s32.totalorder %s15, 1
      %p54 = scmp.ne.s32.totalorder %s49, %s51
      %p55 = scmp.eq.s32.totalorder %s15, 0
      %p56 = por %p54, %p55
      %p57 = scmp.ne.s32.totalorder %s49, %s51
      %p58 = scmp.eq.s32.totalorder %s20, 1
      %p59 = por %p57, %p58
      %p60 = scmp.ne.s32.totalorder %s51, %s52
      %p61 = scmp.eq.s32.totalorder %s20, 0
      %p62 = por %p60, %p61
      %p63 = scmp.ne.s32.totalorder %s51, %s52
      %p64 = scmp.eq.s32.totalorder %s21, 1
      %p65 = por %p63, %p64
      %p67 = scmp.ne.s32.totalorder %s52, %s66
      %p68 = scmp.eq.s32.totalorder %s21, 0
      %p69 = por %p67, %p68
      %s71 = sadd.s32 %s70, 1
      %p74 = scmp.eq.s32.totalorder %s15, 1
      %p75 = scmp.ne.s32.totalorder %s70, %s72
      %p76 = scmp.eq.s32.totalorder %s15, 0
      %p77 = por %p75, %p76
      %p78 = scmp.ne.s32.totalorder %s70, %s72
      %p79 = scmp.eq.s32.totalorder %s20, 1
      %p80 = por %p78, %p79
      %p81 = scmp.ne.s32.totalorder %s72, %s73
      %p82 = scmp.eq.s32.totalorder %s20, 0
      %p83 = por %p81, %p82
      %p84 = scmp.ne.s32.totalorder %s72, %s73
      %p85 = scmp.eq.s32.totalorder %s21, 1
      %p86 = por %p84, %p85
      %p88 = scmp.ne.s32.totalorder %s73, %s87
      %p89 = scmp.eq.s32.totalorder %s21, 0
      %p90 = por %p88, %p89
      %s91 = ssub.s32 %s15, %s22
      %p92 = scmp.eq.s32.totalorder %s91, 0
      %s94 = sadd.s32 %s93, 1
      %s95 = scalar_select %p92, %s93, %s94
      %p98 = pneg %p92
      %p99 = scmp.eq.s32.totalorder %s15, 1
      %p100 = por %p98, %p99
      %p101 = scmp.ne.s32.totalorder %s93, %s96
      %p102 = scmp.eq.s32.totalorder %s15, 0
      %p103 = por %p101, %p102
      %p104 = scmp.ne.s32.totalorder %s93, %s96
      %p105 = scmp.eq.s32.totalorder %s20, 1
      %p106 = por %p104, %p105
      %p107 = scmp.ne.s32.totalorder %s96, %s97
      %p108 = scmp.eq.s32.totalorder %s20, 0
      %p109 = por %p107, %p108
      %p110 = scmp.ne.s32.totalorder %s96, %s97
      %p111 = scmp.eq.s32.totalorder %s21, 1
      %p112 = por %p110, %p111
      %p114 = scmp.ne.s32.totalorder %s97, %s113
      %p115 = scmp.eq.s32.totalorder %s21, 0
      %p116 = por %p114, %p115
      %p117 = scmp.le.s32.totalorder 1, %s15
      %p118 = scmp.lt.s32.totalorder %s15, 3
      %p119 = pnand %p117, %p118
      %p120 = pneg %p119
      // Predicated region
      $region9: #{tpu_custom_call.1} parent=5 // pred_check
        _
      $region10: #{tpu_custom_call.1} parent=5 // pred_check_branch
        %122 = sbr.rel (%p119) target = $region12
      $region11: #{tpu_custom_call.1} parent=5 // pred_region
        %s123 = ssub.s32 %s15, 1
        // Predicated region
        $region13: #{tpu_custom_call.1} parent=11 // pred_check
          %p124 = pneg %p62
        $region14: #{tpu_custom_call.1} parent=11 // pred_check_branch
          %126 = sbr.rel (%p124) target = $region16
        $region15: #{tpu_custom_call.1} parent=11 // pred_region
          _
        $region16: #{tpu_custom_call.1} parent=11 // pred_fallthru
          _
        // Predicated region
        $region17: #{tpu_custom_call.1} parent=11 // pred_check
          %p127 = pneg %p83
        $region18: #{tpu_custom_call.1} parent=11 // pred_check_branch
          %129 = sbr.rel (%p127) target = $region20
        $region19: #{tpu_custom_call.1} parent=11 // pred_region
          _
        $region20: #{tpu_custom_call.1} parent=11 // pred_fallthru
          _
      $region12: #{tpu_custom_call.1} parent=5 // pred_fallthru
        _
      %p130 = scmp.lt.s32.totalorder %s15, 2
      // Predicated region
      $region21: #{tpu_custom_call.1} parent=5 // pred_check
        %p131 = pneg %p130
      $region22: #{tpu_custom_call.1} parent=5 // pred_check_branch
        %133 = sbr.rel (%p131) target = $region24
      $region23: #{tpu_custom_call.1} parent=5 // pred_region
        // Predicated region
        $region25: #{tpu_custom_call.1} parent=23 // pred_check
          %p134 = pneg %p35
        $region26: #{tpu_custom_call.1} parent=23 // pred_check_branch
          %136 = sbr.rel (%p134) target = $region28
        $region27: #{tpu_custom_call.1} parent=23 // pred_region
          %s137 = sand.u32 %s25, 1
          %s138 = scalar_lea.sflag [#allocation3], %s137
          %s139 = sand.u32 %s25, 1
          %s140 = smul.addr %s139, 64
          %s141 = scalar_lea.vmem [#allocation2], %s140
          %s143 = ssub.s32 1024, 1024
          %144 = vsyncadd %s138, %s143
          %s145 = smul.addr %s15, 8
          %s146 = smul.addr %s145, 128
          %s147 = scalar_lea.hbm %s0, %s146
          %s148 = sshll.u32 %s141, 4
          %s149 = int_to_ptr.vmem [resolvable:$true] %s148
          %154 = dma.hbm_to_vmem [thread:$0]  %s147, 1024, %s149, %s138, 128, 128, 8
        $region28: #{tpu_custom_call.1} parent=23 // pred_fallthru
          _
      $region24: #{tpu_custom_call.1} parent=5 // pred_fallthru
        _
      %p155 = scmp.le.s32.totalorder 1, %s15
      %p156 = scmp.lt.s32.totalorder %s15, 3
      %p157 = pnand %p155, %p156
      %p158 = pneg %p157
      // Predicated region
      $region29: #{tpu_custom_call.1} parent=5 // pred_check
        _
      $region30: #{tpu_custom_call.1} parent=5 // pred_check_branch
        %160 = sbr.rel (%p157) target = $region32
      $region31: #{tpu_custom_call.1} parent=5 // pred_region
        %s161 = ssub.s32 %s15, 1
        %s162 = sand.u32 %s28, 1
        %s163 = scalar_lea.sflag [#allocation3], %s162
        %s164 = sand.u32 %s28, 1
        %s165 = smul.addr %s164, 64
        %s166 = scalar_lea.vmem [#allocation2], %s165
        // Predicated region
        $region33: #{tpu_custom_call.1} parent=31 // pred_check
          %p167 = pneg %p41
        $region34: #{tpu_custom_call.1} parent=31 // pred_check_branch
          %169 = sbr.rel (%p167) target = $region36
        $region35: #{tpu_custom_call.1} parent=31 // pred_region
          %170 = dma.done %s163, 1024
        $region36: #{tpu_custom_call.1} parent=31 // pred_fallthru
          _
        %s171 = sand.u32 %s28, 1
        %s172 = scalar_lea.sflag [#allocation3], %s171
        %s173 = sand.u32 %s28, 1
        %s174 = smul.addr %s173, 64
        %s175 = scalar_lea.vmem [#allocation2], %s174
        %p176 = pneg %p41
        %p177 = pneg %p38
        %p178 = pneg %p62
        %p179 = pneg %p59
        %p180 = pneg %p83
        %p181 = pneg %p80
        %p182 = pneg %p109
        %p183 = pneg %p106
        %s184 = sand.u32 %s96, 1
        %s185 = scalar_lea.sflag [#allocation4], %s184
        %s186 = sand.u32 %s96, 1
        %s187 = smul.addr %s186, 8
        %s188 = scalar_lea.vmem [#allocation5], %s187
        %v189 = vld [vmem:[%s166] sm:$0xff]
        %v190 = vld [vmem:[%s166 + $0x8] sm:$0xff]
        %v191 = vld [vmem:[%s166 + $0x10] sm:$0xff]
        %v192 = vld [vmem:[%s166 + $0x18] sm:$0xff]
        %v193 = vld [vmem:[%s166 + $0x20] sm:$0xff]
        %v194 = vld [vmem:[%s166 + $0x28] sm:$0xff]
        %v195 = vld [vmem:[%s166 + $0x30] sm:$0xff]
        %v196 = vld [vmem:[%s166 + $0x38] sm:$0xff]
        %205 = vrot.lane.b32.xlu0 %v189, 1
        %v206 = vpop.permute.xlu0 %205
        %207 = vrot.lane.b32.xlu0 %v190, 1
        %v208 = vpop.permute.xlu0 %207
        %209 = vrot.lane.b32.xlu0 %v191, 1
        %v210 = vpop.permute.xlu0 %209
        %211 = vrot.lane.b32.xlu0 %v192, 1
        %v212 = vpop.permute.xlu0 %211
        %213 = vrot.lane.b32.xlu0 %v193, 1
        %v214 = vpop.permute.xlu0 %213
        %215 = vrot.lane.b32.xlu0 %v194, 1
        %v216 = vpop.permute.xlu0 %215
        %217 = vrot.lane.b32.xlu0 %v195, 1
        %v218 = vpop.permute.xlu0 %217
        %219 = vrot.lane.b32.xlu0 %v196, 1
        %v220 = vpop.permute.xlu0 %219
        %vm229 = vcmask 7168
        %v230 = vsel %vm229, 0.0, %v206
        %v231 = vsel %vm229, 0.0, %v208
        %v232 = vsel %vm229, 0.0, %v210
        %v233 = vsel %vm229, 0.0, %v212
        %v234 = vsel %vm229, 0.0, %v214
        %v235 = vsel %vm229, 0.0, %v216
        %v236 = vsel %vm229, 0.0, %v218
        %v237 = vsel %vm229, 0.0, %v220
        %vm238 = vcmask 138240
        %v239 = vsel %vm238, %v230, 0.0
        %v240 = vsel %vm238, %v231, 0.0
        %v241 = vsel %vm238, %v232, 0.0
        %v242 = vsel %vm238, %v233, 0.0
        %v243 = vsel %vm238, %v234, 0.0
        %v244 = vsel %vm238, %v235, 0.0
        %v245 = vsel %vm238, %v236, 0.0
        %v246 = vsel %vm238, %v237, 0.0
        %vm255 = vcmask 1040384
        %v256 = vrot.slane %v239, 7
        %v257 = vrot.slane %v240, 7
        %v258 = vsel %vm255, %v256, %v257
        %v259 = vrot.slane %v241, 7
        %v260 = vrot.slane %v242, 7
        %v261 = vsel %vm255, %v259, %v260
        %v262 = vrot.slane %v243, 7
        %v263 = vrot.slane %v244, 7
        %v264 = vsel %vm255, %v262, %v263
        %v265 = vrot.slane %v245, 7
        %v266 = vrot.slane %v246, 7
        %v267 = vsel %vm255, %v265, %v266
        %v280 = vsel %vm255, 0.0, %v256
        %v281 = vsel %vm255, 0.0, %v259
        %v282 = vsel %vm255, 0.0, %v262
        %v283 = vsel %vm255, 0.0, %v265
        %v284 = vsel %vm255, %v257, 0.0
        %v285 = vsel %vm255, %v260, 0.0
        %v286 = vsel %vm255, %v263, 0.0
        %v287 = vsel %vm255, %v266, 0.0
        %v288 = vcombine.low %v280, %v282
        %v289 = vcombine.high %v280, %v282
        %v291 = vunpack.c.l.s4 1983009808
        %v292 = vunpack.c.0.s8 %v291
        %v293 = vlaneseq
        %v294 = vshrl.u32 %v293, 7
        %v295 = vsub.s32 %v292, %v294
        %v296 = vrot.slane %v288, %v295
        %v298 = vunpack.c.l.s4 1983009808
        %v299 = vunpack.c.0.s8 %v298
        %v300 = vlaneseq
        %v301 = vshrl.u32 %v300, 7
        %v302 = vsub.s32 %v299, %v301
        %v303 = vrot.slane %v289, %v302
        %v304 = vcombine.low %v281, %v283
        %v305 = vcombine.high %v281, %v283
        %v307 = vunpack.c.l.s4 1983009808
        %v308 = vunpack.c.0.s8 %v307
        %v309 = vlaneseq
        %v310 = vshrl.u32 %v309, 7
        %v311 = vsub.s32 %v308, %v310
        %v312 = vrot.slane %v304, %v311
        %v314 = vunpack.c.l.s4 1983009808
        %v315 = vunpack.c.0.s8 %v314
        %v316 = vlaneseq
        %v317 = vshrl.u32 %v316, 7
        %v318 = vsub.s32 %v315, %v317
        %v319 = vrot.slane %v305, %v318
        %v320 = vcombine.low %v296, %v312
        %v321 = vcombine.high %v296, %v312
        %v323 = vunpack.c.l.s4 1934713408
        %v324 = vunpack.c.0.s8 %v323
        %v325 = vlaneseq
        %v326 = vshrl.u32 %v325, 7
        %v327 = vsub.s32 %v324, %v326
        %v328 = vrot.slane %v320, %v327
        %v330 = vunpack.c.l.s4 1934713408
        %v331 = vunpack.c.0.s8 %v330
        %v332 = vlaneseq
        %v333 = vshrl.u32 %v332, 7
        %v334 = vsub.s32 %v331, %v333
        %v335 = vrot.slane %v321, %v334
        %v336 = vcombine.low %v303, %v319
        %v337 = vcombine.high %v303, %v319
        %v339 = vunpack.c.l.s4 1934713408
        %v340 = vunpack.c.0.s8 %v339
        %v341 = vlaneseq
        %v342 = vshrl.u32 %v341, 7
        %v343 = vsub.s32 %v340, %v342
        %v344 = vrot.slane %v336, %v343
        %v346 = vunpack.c.l.s4 1934713408
        %v347 = vunpack.c.0.s8 %v346
        %v348 = vlaneseq
        %v349 = vshrl.u32 %v348, 7
        %v350 = vsub.s32 %v347, %v349
        %v351 = vrot.slane %v337, %v350
        %v352 = vcombine.high %v328, 0.0
        %v353 = vcombine.high %v335, 0.0
        %v354 = vcombine.high %v344, 0.0
        %v355 = vcombine.high %v351, 0.0
        %v356 = vcombine.low %v258, %v264
        %v357 = vcombine.high %v258, %v264
        %v359 = vunpack.c.l.s4 1983009808
        %v360 = vunpack.c.0.s8 %v359
        %v361 = vlaneseq
        %v362 = vshrl.u32 %v361, 7
        %v363 = vsub.s32 %v360, %v362
        %v364 = vrot.slane %v356, %v363
        %v366 = vunpack.c.l.s4 1983009808
        %v367 = vunpack.c.0.s8 %v366
        %v368 = vlaneseq
        %v369 = vshrl.u32 %v368, 7
        %v370 = vsub.s32 %v367, %v369
        %v371 = vrot.slane %v357, %v370
        %v372 = vcombine.low %v261, %v267
        %v373 = vcombine.high %v261, %v267
        %v375 = vunpack.c.l.s4 1983009808
        %v376 = vunpack.c.0.s8 %v375
        %v377 = vlaneseq
        %v378 = vshrl.u32 %v377, 7
        %v379 = vsub.s32 %v376, %v378
        %v380 = vrot.slane %v372, %v379
        %v382 = vunpack.c.l.s4 1983009808
        %v383 = vunpack.c.0.s8 %v382
        %v384 = vlaneseq
        %v385 = vshrl.u32 %v384, 7
        %v386 = vsub.s32 %v383, %v385
        %v387 = vrot.slane %v373, %v386
        %v388 = vcombine.low %v364, %v380
        %v389 = vcombine.high %v364, %v380
        %v391 = vunpack.c.l.s4 1934713408
        %v392 = vunpack.c.0.s8 %v391
        %v393 = vlaneseq
        %v394 = vshrl.u32 %v393, 7
        %v395 = vsub.s32 %v392, %v394
        %v396 = vrot.slane %v388, %v395
        %v398 = vunpack.c.l.s4 1934713408
        %v399 = vunpack.c.0.s8 %v398
        %v400 = vlaneseq
        %v401 = vshrl.u32 %v400, 7
        %v402 = vsub.s32 %v399, %v401
        %v403 = vrot.slane %v389, %v402
        %v404 = vcombine.low %v371, %v387
        %v405 = vcombine.high %v371, %v387
        %v407 = vunpack.c.l.s4 1934713408
        %v408 = vunpack.c.0.s8 %v407
        %v409 = vlaneseq
        %v410 = vshrl.u32 %v409, 7
        %v411 = vsub.s32 %v408, %v410
        %v412 = vrot.slane %v404, %v411
        %v414 = vunpack.c.l.s4 1934713408
        %v415 = vunpack.c.0.s8 %v414
        %v416 = vlaneseq
        %v417 = vshrl.u32 %v416, 7
        %v418 = vsub.s32 %v415, %v417
        %v419 = vrot.slane %v405, %v418
        %v420 = vcombine.high %v396, 0.0
        %v421 = vcombine.high %v403, 0.0
        %v422 = vcombine.high %v412, 0.0
        %v423 = vcombine.high %v419, 0.0
        %425 = vrot.lane.b32.xlu0 %v352, 16
        %v426 = vpop.permute.xlu0 %425
        %429 = vrot.lane.b32.xlu0 %v335, 32
        %v430 = vpop.permute.xlu0 %429
        %433 = vrot.lane.b32.xlu0 %v353, 48
        %v434 = vpop.permute.xlu0 %433
        %437 = vrot.lane.b32.xlu0 %v344, 64
        %v438 = vpop.permute.xlu0 %437
        %441 = vrot.lane.b32.xlu0 %v354, 80
        %v442 = vpop.permute.xlu0 %441
        %445 = vrot.lane.b32.xlu0 %v351, 96
        %v446 = vpop.permute.xlu0 %445
        %449 = vrot.lane.b32.xlu0 %v355, 112
        %v450 = vpop.permute.xlu0 %449
        %453 = vrot.lane.b32.xlu0 %v420, 16
        %v454 = vpop.permute.xlu0 %453
        %457 = vrot.lane.b32.xlu0 %v403, 32
        %v458 = vpop.permute.xlu0 %457
        %461 = vrot.lane.b32.xlu0 %v421, 48
        %v462 = vpop.permute.xlu0 %461
        %465 = vrot.lane.b32.xlu0 %v412, 64
        %v466 = vpop.permute.xlu0 %465
        %469 = vrot.lane.b32.xlu0 %v422, 80
        %v470 = vpop.permute.xlu0 %469
        %473 = vrot.lane.b32.xlu0 %v419, 96
        %v474 = vpop.permute.xlu0 %473
        %477 = vrot.lane.b32.xlu0 %v423, 112
        %v478 = vpop.permute.xlu0 %477
        %vm480 = vcmask 130048
        %v481 = vsel %vm480, %v328, %v426
        %vm482 = vcmask 261120
        %v483 = vsel %vm482, %v481, %v430
        %vm484 = vcmask 392192
        %v485 = vsel %vm484, %v483, %v434
        %vm486 = vcmask 523264
        %v487 = vsel %vm486, %v485, %v438
        %vm488 = vcmask 654336
        %v489 = vsel %vm488, %v487, %v442
        %vm490 = vcmask 785408
        %v491 = vsel %vm490, %v489, %v446
        %vm492 = vcmask 916480
        %v493 = vsel %vm492, %v491, %v450
        %v494 = vsel %vm480, %v396, %v454
        %v495 = vsel %vm482, %v494, %v458
        %v496 = vsel %vm484, %v495, %v462
        %v497 = vsel %vm486, %v496, %v466
        %v498 = vsel %vm488, %v497, %v470
        %v499 = vsel %vm490, %v498, %v474
        %v500 = vsel %vm492, %v499, %v478
        %505 = vrot.lane.b32.xlu0 %v280, 127
        %v506 = vpop.permute.xlu0 %505
        %507 = vrot.lane.b32.xlu0 %v258, 127
        %v508 = vpop.permute.xlu0 %507
        %509 = vrot.lane.b32.xlu0 %v281, 127
        %v510 = vpop.permute.xlu0 %509
        %511 = vrot.lane.b32.xlu0 %v261, 127
        %v512 = vpop.permute.xlu0 %511
        %513 = vrot.lane.b32.xlu0 %v282, 127
        %v514 = vpop.permute.xlu0 %513
        %515 = vrot.lane.b32.xlu0 %v264, 127
        %v516 = vpop.permute.xlu0 %515
        %517 = vrot.lane.b32.xlu0 %v283, 127
        %v518 = vpop.permute.xlu0 %517
        %519 = vrot.lane.b32.xlu0 %v267, 127
        %v520 = vpop.permute.xlu0 %519
        %v529 = vcombine.low %v506, %v514
        %v530 = vcombine.high %v506, %v514
        %v532 = vunpack.c.l.s4 1983009808
        %v533 = vunpack.c.0.s8 %v532
        %v534 = vlaneseq
        %v535 = vshrl.u32 %v534, 7
        %v536 = vsub.s32 %v533, %v535
        %v537 = vrot.slane %v529, %v536
        %v539 = vunpack.c.l.s4 1983009808
        %v540 = vunpack.c.0.s8 %v539
        %v541 = vlaneseq
        %v542 = vshrl.u32 %v541, 7
        %v543 = vsub.s32 %v540, %v542
        %v544 = vrot.slane %v530, %v543
        %v545 = vcombine.low %v510, %v518
        %v546 = vcombine.high %v510, %v518
        %v548 = vunpack.c.l.s4 1983009808
        %v549 = vunpack.c.0.s8 %v548
        %v550 = vlaneseq
        %v551 = vshrl.u32 %v550, 7
        %v552 = vsub.s32 %v549, %v551
        %v553 = vrot.slane %v545, %v552
        %v555 = vunpack.c.l.s4 1983009808
        %v556 = vunpack.c.0.s8 %v555
        %v557 = vlaneseq
        %v558 = vshrl.u32 %v557, 7
        %v559 = vsub.s32 %v556, %v558
        %v560 = vrot.slane %v546, %v559
        %v561 = vcombine.low %v537, %v553
        %v562 = vcombine.high %v537, %v553
        %v564 = vunpack.c.l.s4 1934713408
        %v565 = vunpack.c.0.s8 %v564
        %v566 = vlaneseq
        %v567 = vshrl.u32 %v566, 7
        %v568 = vsub.s32 %v565, %v567
        %v569 = vrot.slane %v561, %v568
        %v571 = vunpack.c.l.s4 1934713408
        %v572 = vunpack.c.0.s8 %v571
        %v573 = vlaneseq
        %v574 = vshrl.u32 %v573, 7
        %v575 = vsub.s32 %v572, %v574
        %v576 = vrot.slane %v562, %v575
        %v577 = vcombine.low %v544, %v560
        %v578 = vcombine.high %v544, %v560
        %v580 = vunpack.c.l.s4 1934713408
        %v581 = vunpack.c.0.s8 %v580
        %v582 = vlaneseq
        %v583 = vshrl.u32 %v582, 7
        %v584 = vsub.s32 %v581, %v583
        %v585 = vrot.slane %v577, %v584
        %v587 = vunpack.c.l.s4 1934713408
        %v588 = vunpack.c.0.s8 %v587
        %v589 = vlaneseq
        %v590 = vshrl.u32 %v589, 7
        %v591 = vsub.s32 %v588, %v590
        %v592 = vrot.slane %v578, %v591
        %v593 = vcombine.high %v569, 0.0
        %v594 = vcombine.high %v576, 0.0
        %v595 = vcombine.high %v585, 0.0
        %v596 = vcombine.high %v592, 0.0
        %v597 = vcombine.low %v508, %v516
        %v598 = vcombine.high %v508, %v516
        %v600 = vunpack.c.l.s4 1983009808
        %v601 = vunpack.c.0.s8 %v600
        %v602 = vlaneseq
        %v603 = vshrl.u32 %v602, 7
        %v604 = vsub.s32 %v601, %v603
        %v605 = vrot.slane %v597, %v604
        %v607 = vunpack.c.l.s4 1983009808
        %v608 = vunpack.c.0.s8 %v607
        %v609 = vlaneseq
        %v610 = vshrl.u32 %v609, 7
        %v611 = vsub.s32 %v608, %v610
        %v612 = vrot.slane %v598, %v611
        %v613 = vcombine.low %v512, %v520
        %v614 = vcombine.high %v512, %v520
        %v616 = vunpack.c.l.s4 1983009808
        %v617 = vunpack.c.0.s8 %v616
        %v618 = vlaneseq
        %v619 = vshrl.u32 %v618, 7
        %v620 = vsub.s32 %v617, %v619
        %v621 = vrot.slane %v613, %v620
        %v623 = vunpack.c.l.s4 1983009808
        %v624 = vunpack.c.0.s8 %v623
        %v625 = vlaneseq
        %v626 = vshrl.u32 %v625, 7
        %v627 = vsub.s32 %v624, %v626
        %v628 = vrot.slane %v614, %v627
        %v629 = vcombine.low %v605, %v621
        %v630 = vcombine.high %v605, %v621
        %v632 = vunpack.c.l.s4 1934713408
        %v633 = vunpack.c.0.s8 %v632
        %v634 = vlaneseq
        %v635 = vshrl.u32 %v634, 7
        %v636 = vsub.s32 %v633, %v635
        %v637 = vrot.slane %v629, %v636
        %v639 = vunpack.c.l.s4 1934713408
        %v640 = vunpack.c.0.s8 %v639
        %v641 = vlaneseq
        %v642 = vshrl.u32 %v641, 7
        %v643 = vsub.s32 %v640, %v642
        %v644 = vrot.slane %v630, %v643
        %v645 = vcombine.low %v612, %v628
        %v646 = vcombine.high %v612, %v628
        %v648 = vunpack.c.l.s4 1934713408
        %v649 = vunpack.c.0.s8 %v648
        %v650 = vlaneseq
        %v651 = vshrl.u32 %v650, 7
        %v652 = vsub.s32 %v649, %v651
        %v653 = vrot.slane %v645, %v652
        %v655 = vunpack.c.l.s4 1934713408
        %v656 = vunpack.c.0.s8 %v655
        %v657 = vlaneseq
        %v658 = vshrl.u32 %v657, 7
        %v659 = vsub.s32 %v656, %v658
        %v660 = vrot.slane %v646, %v659
        %v661 = vcombine.high %v637, 0.0
        %v662 = vcombine.high %v644, 0.0
        %v663 = vcombine.high %v653, 0.0
        %v664 = vcombine.high %v660, 0.0
        %666 = vrot.lane.b32.xlu0 %v593, 16
        %v667 = vpop.permute.xlu0 %666
        %670 = vrot.lane.b32.xlu0 %v576, 32
        %v671 = vpop.permute.xlu0 %670
        %674 = vrot.lane.b32.xlu0 %v594, 48
        %v675 = vpop.permute.xlu0 %674
        %678 = vrot.lane.b32.xlu0 %v585, 64
        %v679 = vpop.permute.xlu0 %678
        %682 = vrot.lane.b32.xlu0 %v595, 80
        %v683 = vpop.permute.xlu0 %682
        %686 = vrot.lane.b32.xlu0 %v592, 96
        %v687 = vpop.permute.xlu0 %686
        %690 = vrot.lane.b32.xlu0 %v596, 112
        %v691 = vpop.permute.xlu0 %690
        %694 = vrot.lane.b32.xlu0 %v661, 16
        %v695 = vpop.permute.xlu0 %694
        %698 = vrot.lane.b32.xlu0 %v644, 32
        %v699 = vpop.permute.xlu0 %698
        %702 = vrot.lane.b32.xlu0 %v662, 48
        %v703 = vpop.permute.xlu0 %702
        %706 = vrot.lane.b32.xlu0 %v653, 64
        %v707 = vpop.permute.xlu0 %706
        %710 = vrot.lane.b32.xlu0 %v663, 80
        %v711 = vpop.permute.xlu0 %710
        %714 = vrot.lane.b32.xlu0 %v660, 96
        %v715 = vpop.permute.xlu0 %714
        %718 = vrot.lane.b32.xlu0 %v664, 112
        %v719 = vpop.permute.xlu0 %718
        %v721 = vsel %vm480, %v569, %v667
        %v722 = vsel %vm482, %v721, %v671
        %v723 = vsel %vm484, %v722, %v675
        %v724 = vsel %vm486, %v723, %v679
        %v725 = vsel %vm488, %v724, %v683
        %v726 = vsel %vm490, %v725, %v687
        %v727 = vsel %vm492, %v726, %v691
        %v728 = vsel %vm480, %v637, %v695
        %v729 = vsel %vm482, %v728, %v699
        %v730 = vsel %vm484, %v729, %v703
        %v731 = vsel %vm486, %v730, %v707
        %v732 = vsel %vm488, %v731, %v711
        %v733 = vsel %vm490, %v732, %v715
        %v734 = vsel %vm492, %v733, %v719
        %735 = vrot.lane.b32.xlu0 %v280, 126
        %v736 = vpop.permute.xlu0 %735
        %737 = vrot.lane.b32.xlu0 %v258, 126
        %v738 = vpop.permute.xlu0 %737
        %739 = vrot.lane.b32.xlu0 %v281, 126
        %v740 = vpop.permute.xlu0 %739
        %741 = vrot.lane.b32.xlu0 %v261, 126
        %v742 = vpop.permute.xlu0 %741
        %743 = vrot.lane.b32.xlu0 %v282, 126
        %v744 = vpop.permute.xlu0 %743
        %745 = vrot.lane.b32.xlu0 %v264, 126
        %v746 = vpop.permute.xlu0 %745
        %747 = vrot.lane.b32.xlu0 %v283, 126
        %v748 = vpop.permute.xlu0 %747
        %749 = vrot.lane.b32.xlu0 %v267, 126
        %v750 = vpop.permute.xlu0 %749
        %v759 = vcombine.low %v736, %v744
        %v760 = vcombine.high %v736, %v744
        %v762 = vunpack.c.l.s4 1983009808
        %v763 = vunpack.c.0.s8 %v762
        %v764 = vlaneseq
        %v765 = vshrl.u32 %v764, 7
        %v766 = vsub.s32 %v763, %v765
        %v767 = vrot.slane %v759, %v766
        %v769 = vunpack.c.l.s4 1983009808
        %v770 = vunpack.c.0.s8 %v769
        %v771 = vlaneseq
        %v772 = vshrl.u32 %v771, 7
        %v773 = vsub.s32 %v770, %v772
        %v774 = vrot.slane %v760, %v773
        %v775 = vcombine.low %v740, %v748
        %v776 = vcombine.high %v740, %v748
        %v778 = vunpack.c.l.s4 1983009808
        %v779 = vunpack.c.0.s8 %v778
        %v780 = vlaneseq
        %v781 = vshrl.u32 %v780, 7
        %v782 = vsub.s32 %v779, %v781
        %v783 = vrot.slane %v775, %v782
        %v785 = vunpack.c.l.s4 1983009808
        %v786 = vunpack.c.0.s8 %v785
        %v787 = vlaneseq
        %v788 = vshrl.u32 %v787, 7
        %v789 = vsub.s32 %v786, %v788
        %v790 = vrot.slane %v776, %v789
        %v791 = vcombine.low %v767, %v783
        %v792 = vcombine.high %v767, %v783
        %v794 = vunpack.c.l.s4 1934713408
        %v795 = vunpack.c.0.s8 %v794
        %v796 = vlaneseq
        %v797 = vshrl.u32 %v796, 7
        %v798 = vsub.s32 %v795, %v797
        %v799 = vrot.slane %v791, %v798
        %v801 = vunpack.c.l.s4 1934713408
        %v802 = vunpack.c.0.s8 %v801
        %v803 = vlaneseq
        %v804 = vshrl.u32 %v803, 7
        %v805 = vsub.s32 %v802, %v804
        %v806 = vrot.slane %v792, %v805
        %v807 = vcombine.low %v774, %v790
        %v808 = vcombine.high %v774, %v790
        %v810 = vunpack.c.l.s4 1934713408
        %v811 = vunpack.c.0.s8 %v810
        %v812 = vlaneseq
        %v813 = vshrl.u32 %v812, 7
        %v814 = vsub.s32 %v811, %v813
        %v815 = vrot.slane %v807, %v814
        %v817 = vunpack.c.l.s4 1934713408
        %v818 = vunpack.c.0.s8 %v817
        %v819 = vlaneseq
        %v820 = vshrl.u32 %v819, 7
        %v821 = vsub.s32 %v818, %v820
        %v822 = vrot.slane %v808, %v821
        %v823 = vcombine.high %v799, 0.0
        %v824 = vcombine.high %v806, 0.0
        %v825 = vcombine.high %v815, 0.0
        %v826 = vcombine.high %v822, 0.0
        %v827 = vcombine.low %v738, %v746
        %v828 = vcombine.high %v738, %v746
        %v830 = vunpack.c.l.s4 1983009808
        %v831 = vunpack.c.0.s8 %v830
        %v832 = vlaneseq
        %v833 = vshrl.u32 %v832, 7
        %v834 = vsub.s32 %v831, %v833
        %v835 = vrot.slane %v827, %v834
        %v837 = vunpack.c.l.s4 1983009808
        %v838 = vunpack.c.0.s8 %v837
        %v839 = vlaneseq
        %v840 = vshrl.u32 %v839, 7
        %v841 = vsub.s32 %v838, %v840
        %v842 = vrot.slane %v828, %v841
        %v843 = vcombine.low %v742, %v750
        %v844 = vcombine.high %v742, %v750
        %v846 = vunpack.c.l.s4 1983009808
        %v847 = vunpack.c.0.s8 %v846
        %v848 = vlaneseq
        %v849 = vshrl.u32 %v848, 7
        %v850 = vsub.s32 %v847, %v849
        %v851 = vrot.slane %v843, %v850
        %v853 = vunpack.c.l.s4 1983009808
        %v854 = vunpack.c.0.s8 %v853
        %v855 = vlaneseq
        %v856 = vshrl.u32 %v855, 7
        %v857 = vsub.s32 %v854, %v856
        %v858 = vrot.slane %v844, %v857
        %v859 = vcombine.low %v835, %v851
        %v860 = vcombine.high %v835, %v851
        %v862 = vunpack.c.l.s4 1934713408
        %v863 = vunpack.c.0.s8 %v862
        %v864 = vlaneseq
        %v865 = vshrl.u32 %v864, 7
        %v866 = vsub.s32 %v863, %v865
        %v867 = vrot.slane %v859, %v866
        %v869 = vunpack.c.l.s4 1934713408
        %v870 = vunpack.c.0.s8 %v869
        %v871 = vlaneseq
        %v872 = vshrl.u32 %v871, 7
        %v873 = vsub.s32 %v870, %v872
        %v874 = vrot.slane %v860, %v873
        %v875 = vcombine.low %v842, %v858
        %v876 = vcombine.high %v842, %v858
        %v878 = vunpack.c.l.s4 1934713408
        %v879 = vunpack.c.0.s8 %v878
        %v880 = vlaneseq
        %v881 = vshrl.u32 %v880, 7
        %v882 = vsub.s32 %v879, %v881
        %v883 = vrot.slane %v875, %v882
        %v885 = vunpack.c.l.s4 1934713408
        %v886 = vunpack.c.0.s8 %v885
        %v887 = vlaneseq
        %v888 = vshrl.u32 %v887, 7
        %v889 = vsub.s32 %v886, %v888
        %v890 = vrot.slane %v876, %v889
        %v891 = vcombine.high %v867, 0.0
        %v892 = vcombine.high %v874, 0.0
        %v893 = vcombine.high %v883, 0.0
        %v894 = vcombine.high %v890, 0.0
        %896 = vrot.lane.b32.xlu0 %v823, 16
        %v897 = vpop.permute.xlu0 %896
        %900 = vrot.lane.b32.xlu0 %v806, 32
        %v901 = vpop.permute.xlu0 %900
        %904 = vrot.lane.b32.xlu0 %v824, 48
        %v905 = vpop.permute.xlu0 %904
        %908 = vrot.lane.b32.xlu0 %v815, 64
        %v909 = vpop.permute.xlu0 %908
        %912 = vrot.lane.b32.xlu0 %v825, 80
        %v913 = vpop.permute.xlu0 %912
        %916 = vrot.lane.b32.xlu0 %v822, 96
        %v917 = vpop.permute.xlu0 %916
        %920 = vrot.lane.b32.xlu0 %v826, 112
        %v921 = vpop.permute.xlu0 %920
        %924 = vrot.lane.b32.xlu0 %v891, 16
        %v925 = vpop.permute.xlu0 %924
        %928 = vrot.lane.b32.xlu0 %v874, 32
        %v929 = vpop.permute.xlu0 %928
        %932 = vrot.lane.b32.xlu0 %v892, 48
        %v933 = vpop.permute.xlu0 %932
        %936 = vrot.lane.b32.xlu0 %v883, 64
        %v937 = vpop.permute.xlu0 %936
        %940 = vrot.lane.b32.xlu0 %v893, 80
        %v941 = vpop.permute.xlu0 %940
        %944 = vrot.lane.b32.xlu0 %v890, 96
        %v945 = vpop.permute.xlu0 %944
        %948 = vrot.lane.b32.xlu0 %v894, 112
        %v949 = vpop.permute.xlu0 %948
        %v951 = vsel %vm480, %v799, %v897
        %v952 = vsel %vm482, %v951, %v901
        %v953 = vsel %vm484, %v952, %v905
        %v954 = vsel %vm486, %v953, %v909
        %v955 = vsel %vm488, %v954, %v913
        %v956 = vsel %vm490, %v955, %v917
        %v957 = vsel %vm492, %v956, %v921
        %v958 = vsel %vm480, %v867, %v925
        %v959 = vsel %vm482, %v958, %v929
        %v960 = vsel %vm484, %v959, %v933
        %v961 = vsel %vm486, %v960, %v937
        %v962 = vsel %vm488, %v961, %v941
        %v963 = vsel %vm490, %v962, %v945
        %v964 = vsel %vm492, %v963, %v949
        %vm969 = vcmask 1046528
        %v970 = vrot.slane %v280, 1
        %v971 = vrot.slane %v258, 1
        %v972 = vsel %vm969, %v970, %v971
        %v973 = vrot.slane %v284, 1
        %v974 = vsel %vm969, %v971, %v973
        %v975 = vrot.slane %v281, 1
        %v976 = vrot.slane %v261, 1
        %v977 = vsel %vm969, %v975, %v976
        %v978 = vrot.slane %v285, 1
        %v979 = vsel %vm969, %v976, %v978
        %v980 = vrot.slane %v282, 1
        %v981 = vrot.slane %v264, 1
        %v982 = vsel %vm969, %v980, %v981
        %v983 = vrot.slane %v286, 1
        %v984 = vsel %vm969, %v981, %v983
        %v985 = vrot.slane %v283, 1
        %v986 = vrot.slane %v267, 1
        %v987 = vsel %vm969, %v985, %v986
        %v988 = vrot.slane %v287, 1
        %v989 = vsel %vm969, %v986, %v988
        %v998 = vcombine.low %v972, %v982
        %v999 = vcombine.high %v972, %v982
        %v1001 = vunpack.c.l.s4 1983009808
        %v1002 = vunpack.c.0.s8 %v1001
        %v1003 = vlaneseq
        %v1004 = vshrl.u32 %v1003, 7
        %v1005 = vsub.s32 %v1002, %v1004
        %v1006 = vrot.slane %v998, %v1005
        %v1008 = vunpack.c.l.s4 1983009808
        %v1009 = vunpack.c.0.s8 %v1008
        %v1010 = vlaneseq
        %v1011 = vshrl.u32 %v1010, 7
        %v1012 = vsub.s32 %v1009, %v1011
        %v1013 = vrot.slane %v999, %v1012
        %v1014 = vcombine.low %v977, %v987
        %v1015 = vcombine.high %v977, %v987
        %v1017 = vunpack.c.l.s4 1983009808
        %v1018 = vunpack.c.0.s8 %v1017
        %v1019 = vlaneseq
        %v1020 = vshrl.u32 %v1019, 7
        %v1021 = vsub.s32 %v1018, %v1020
        %v1022 = vrot.slane %v1014, %v1021
        %v1024 = vunpack.c.l.s4 1983009808
        %v1025 = vunpack.c.0.s8 %v1024
        %v1026 = vlaneseq
        %v1027 = vshrl.u32 %v1026, 7
        %v1028 = vsub.s32 %v1025, %v1027
        %v1029 = vrot.slane %v1015, %v1028
        %v1030 = vcombine.low %v1006, %v1022
        %v1031 = vcombine.high %v1006, %v1022
        %v1033 = vunpack.c.l.s4 1934713408
        %v1034 = vunpack.c.0.s8 %v1033
        %v1035 = vlaneseq
        %v1036 = vshrl.u32 %v1035, 7
        %v1037 = vsub.s32 %v1034, %v1036
        %v1038 = vrot.slane %v1030, %v1037
        %v1040 = vunpack.c.l.s4 1934713408
        %v1041 = vunpack.c.0.s8 %v1040
        %v1042 = vlaneseq
        %v1043 = vshrl.u32 %v1042, 7
        %v1044 = vsub.s32 %v1041, %v1043
        %v1045 = vrot.slane %v1031, %v1044
        %v1046 = vcombine.low %v1013, %v1029
        %v1047 = vcombine.high %v1013, %v1029
        %v1049 = vunpack.c.l.s4 1934713408
        %v1050 = vunpack.c.0.s8 %v1049
        %v1051 = vlaneseq
        %v1052 = vshrl.u32 %v1051, 7
        %v1053 = vsub.s32 %v1050, %v1052
        %v1054 = vrot.slane %v1046, %v1053
        %v1056 = vunpack.c.l.s4 1934713408
        %v1057 = vunpack.c.0.s8 %v1056
        %v1058 = vlaneseq
        %v1059 = vshrl.u32 %v1058, 7
        %v1060 = vsub.s32 %v1057, %v1059
        %v1061 = vrot.slane %v1047, %v1060
        %v1062 = vcombine.high %v1038, 0.0
        %v1063 = vcombine.high %v1045, 0.0
        %v1064 = vcombine.high %v1054, 0.0
        %v1065 = vcombine.high %v1061, 0.0
        %v1066 = vcombine.low %v974, %v984
        %v1067 = vcombine.high %v974, %v984
        %v1069 = vunpack.c.l.s4 1983009808
        %v1070 = vunpack.c.0.s8 %v1069
        %v1071 = vlaneseq
        %v1072 = vshrl.u32 %v1071, 7
        %v1073 = vsub.s32 %v1070, %v1072
        %v1074 = vrot.slane %v1066, %v1073
        %v1076 = vunpack.c.l.s4 1983009808
        %v1077 = vunpack.c.0.s8 %v1076
        %v1078 = vlaneseq
        %v1079 = vshrl.u32 %v1078, 7
        %v1080 = vsub.s32 %v1077, %v1079
        %v1081 = vrot.slane %v1067, %v1080
        %v1082 = vcombine.low %v979, %v989
        %v1083 = vcombine.high %v979, %v989
        %v1085 = vunpack.c.l.s4 1983009808
        %v1086 = vunpack.c.0.s8 %v1085
        %v1087 = vlaneseq
        %v1088 = vshrl.u32 %v1087, 7
        %v1089 = vsub.s32 %v1086, %v1088
        %v1090 = vrot.slane %v1082, %v1089
        %v1092 = vunpack.c.l.s4 1983009808
        %v1093 = vunpack.c.0.s8 %v1092
        %v1094 = vlaneseq
        %v1095 = vshrl.u32 %v1094, 7
        %v1096 = vsub.s32 %v1093, %v1095
        %v1097 = vrot.slane %v1083, %v1096
        %v1098 = vcombine.low %v1074, %v1090
        %v1099 = vcombine.high %v1074, %v1090
        %v1101 = vunpack.c.l.s4 1934713408
        %v1102 = vunpack.c.0.s8 %v1101
        %v1103 = vlaneseq
        %v1104 = vshrl.u32 %v1103, 7
        %v1105 = vsub.s32 %v1102, %v1104
        %v1106 = vrot.slane %v1098, %v1105
        %v1108 = vunpack.c.l.s4 1934713408
        %v1109 = vunpack.c.0.s8 %v1108
        %v1110 = vlaneseq
        %v1111 = vshrl.u32 %v1110, 7
        %v1112 = vsub.s32 %v1109, %v1111
        %v1113 = vrot.slane %v1099, %v1112
        %v1114 = vcombine.low %v1081, %v1097
        %v1115 = vcombine.high %v1081, %v1097
        %v1117 = vunpack.c.l.s4 1934713408
        %v1118 = vunpack.c.0.s8 %v1117
        %v1119 = vlaneseq
        %v1120 = vshrl.u32 %v1119, 7
        %v1121 = vsub.s32 %v1118, %v1120
        %v1122 = vrot.slane %v1114, %v1121
        %v1124 = vunpack.c.l.s4 1934713408
        %v1125 = vunpack.c.0.s8 %v1124
        %v1126 = vlaneseq
        %v1127 = vshrl.u32 %v1126, 7
        %v1128 = vsub.s32 %v1125, %v1127
        %v1129 = vrot.slane %v1115, %v1128
        %v1130 = vcombine.high %v1106, 0.0
        %v1131 = vcombine.high %v1113, 0.0
        %v1132 = vcombine.high %v1122, 0.0
        %v1133 = vcombine.high %v1129, 0.0
        %1135 = vrot.lane.b32.xlu0 %v1062, 16
        %v1136 = vpop.permute.xlu0 %1135
        %1139 = vrot.lane.b32.xlu0 %v1045, 32
        %v1140 = vpop.permute.xlu0 %1139
        %1143 = vrot.lane.b32.xlu0 %v1063, 48
        %v1144 = vpop.permute.xlu0 %1143
        %1147 = vrot.lane.b32.xlu0 %v1054, 64
        %v1148 = vpop.permute.xlu0 %1147
        %1151 = vrot.lane.b32.xlu0 %v1064, 80
        %v1152 = vpop.permute.xlu0 %1151
        %1155 = vrot.lane.b32.xlu0 %v1061, 96
        %v1156 = vpop.permute.xlu0 %1155
        %1159 = vrot.lane.b32.xlu0 %v1065, 112
        %v1160 = vpop.permute.xlu0 %1159
        %1163 = vrot.lane.b32.xlu0 %v1130, 16
        %v1164 = vpop.permute.xlu0 %1163
        %1167 = vrot.lane.b32.xlu0 %v1113, 32
        %v1168 = vpop.permute.xlu0 %1167
        %1171 = vrot.lane.b32.xlu0 %v1131, 48
        %v1172 = vpop.permute.xlu0 %1171
        %1175 = vrot.lane.b32.xlu0 %v1122, 64
        %v1176 = vpop.permute.xlu0 %1175
        %1179 = vrot.lane.b32.xlu0 %v1132, 80
        %v1180 = vpop.permute.xlu0 %1179
        %1183 = vrot.lane.b32.xlu0 %v1129, 96
        %v1184 = vpop.permute.xlu0 %1183
        %1187 = vrot.lane.b32.xlu0 %v1133, 112
        %v1188 = vpop.permute.xlu0 %1187
        %v1190 = vsel %vm480, %v1038, %v1136
        %v1191 = vsel %vm482, %v1190, %v1140
        %v1192 = vsel %vm484, %v1191, %v1144
        %v1193 = vsel %vm486, %v1192, %v1148
        %v1194 = vsel %vm488, %v1193, %v1152
        %v1195 = vsel %vm490, %v1194, %v1156
        %v1196 = vsel %vm492, %v1195, %v1160
        %v1197 = vsel %vm480, %v1106, %v1164
        %v1198 = vsel %vm482, %v1197, %v1168
        %v1199 = vsel %vm484, %v1198, %v1172
        %v1200 = vsel %vm486, %v1199, %v1176
        %v1201 = vsel %vm488, %v1200, %v1180
        %v1202 = vsel %vm490, %v1201, %v1184
        %v1203 = vsel %vm492, %v1202, %v1188
        %1204 = vrot.lane.b32.xlu0 %v972, 127
        %v1205 = vpop.permute.xlu0 %1204
        %1206 = vrot.lane.b32.xlu0 %v974, 127
        %v1207 = vpop.permute.xlu0 %1206
        %1208 = vrot.lane.b32.xlu0 %v977, 127
        %v1209 = vpop.permute.xlu0 %1208
        %1210 = vrot.lane.b32.xlu0 %v979, 127
        %v1211 = vpop.permute.xlu0 %1210
        %1212 = vrot.lane.b32.xlu0 %v982, 127
        %v1213 = vpop.permute.xlu0 %1212
        %1214 = vrot.lane.b32.xlu0 %v984, 127
        %v1215 = vpop.permute.xlu0 %1214
        %1216 = vrot.lane.b32.xlu0 %v987, 127
        %v1217 = vpop.permute.xlu0 %1216
        %1218 = vrot.lane.b32.xlu0 %v989, 127
        %v1219 = vpop.permute.xlu0 %1218
        %v1228 = vcombine.low %v1205, %v1213
        %v1229 = vcombine.high %v1205, %v1213
        %v1231 = vunpack.c.l.s4 1983009808
        %v1232 = vunpack.c.0.s8 %v1231
        %v1233 = vlaneseq
        %v1234 = vshrl.u32 %v1233, 7
        %v1235 = vsub.s32 %v1232, %v1234
        %v1236 = vrot.slane %v1228, %v1235
        %v1238 = vunpack.c.l.s4 1983009808
        %v1239 = vunpack.c.0.s8 %v1238
        %v1240 = vlaneseq
        %v1241 = vshrl.u32 %v1240, 7
        %v1242 = vsub.s32 %v1239, %v1241
        %v1243 = vrot.slane %v1229, %v1242
        %v1244 = vcombine.low %v1209, %v1217
        %v1245 = vcombine.high %v1209, %v1217
        %v1247 = vunpack.c.l.s4 1983009808
        %v1248 = vunpack.c.0.s8 %v1247
        %v1249 = vlaneseq
        %v1250 = vshrl.u32 %v1249, 7
        %v1251 = vsub.s32 %v1248, %v1250
        %v1252 = vrot.slane %v1244, %v1251
        %v1254 = vunpack.c.l.s4 1983009808
        %v1255 = vunpack.c.0.s8 %v1254
        %v1256 = vlaneseq
        %v1257 = vshrl.u32 %v1256, 7
        %v1258 = vsub.s32 %v1255, %v1257
        %v1259 = vrot.slane %v1245, %v1258
        %v1260 = vcombine.low %v1236, %v1252
        %v1261 = vcombine.high %v1236, %v1252
        %v1263 = vunpack.c.l.s4 1934713408
        %v1264 = vunpack.c.0.s8 %v1263
        %v1265 = vlaneseq
        %v1266 = vshrl.u32 %v1265, 7
        %v1267 = vsub.s32 %v1264, %v1266
        %v1268 = vrot.slane %v1260, %v1267
        %v1270 = vunpack.c.l.s4 1934713408
        %v1271 = vunpack.c.0.s8 %v1270
        %v1272 = vlaneseq
        %v1273 = vshrl.u32 %v1272, 7
        %v1274 = vsub.s32 %v1271, %v1273
        %v1275 = vrot.slane %v1261, %v1274
        %v1276 = vcombine.low %v1243, %v1259
        %v1277 = vcombine.high %v1243, %v1259
        %v1279 = vunpack.c.l.s4 1934713408
        %v1280 = vunpack.c.0.s8 %v1279
        %v1281 = vlaneseq
        %v1282 = vshrl.u32 %v1281, 7
        %v1283 = vsub.s32 %v1280, %v1282
        %v1284 = vrot.slane %v1276, %v1283
        %v1286 = vunpack.c.l.s4 1934713408
        %v1287 = vunpack.c.0.s8 %v1286
        %v1288 = vlaneseq
        %v1289 = vshrl.u32 %v1288, 7
        %v1290 = vsub.s32 %v1287, %v1289
        %v1291 = vrot.slane %v1277, %v1290
        %v1292 = vcombine.high %v1268, 0.0
        %v1293 = vcombine.high %v1275, 0.0
        %v1294 = vcombine.high %v1284, 0.0
        %v1295 = vcombine.high %v1291, 0.0
        %v1296 = vcombine.low %v1207, %v1215
        %v1297 = vcombine.high %v1207, %v1215
        %v1299 = vunpack.c.l.s4 1983009808
        %v1300 = vunpack.c.0.s8 %v1299
        %v1301 = vlaneseq
        %v1302 = vshrl.u32 %v1301, 7
        %v1303 = vsub.s32 %v1300, %v1302
        %v1304 = vrot.slane %v1296, %v1303
        %v1306 = vunpack.c.l.s4 1983009808
        %v1307 = vunpack.c.0.s8 %v1306
        %v1308 = vlaneseq
        %v1309 = vshrl.u32 %v1308, 7
        %v1310 = vsub.s32 %v1307, %v1309
        %v1311 = vrot.slane %v1297, %v1310
        %v1312 = vcombine.low %v1211, %v1219
        %v1313 = vcombine.high %v1211, %v1219
        %v1315 = vunpack.c.l.s4 1983009808
        %v1316 = vunpack.c.0.s8 %v1315
        %v1317 = vlaneseq
        %v1318 = vshrl.u32 %v1317, 7
        %v1319 = vsub.s32 %v1316, %v1318
        %v1320 = vrot.slane %v1312, %v1319
        %v1322 = vunpack.c.l.s4 1983009808
        %v1323 = vunpack.c.0.s8 %v1322
        %v1324 = vlaneseq
        %v1325 = vshrl.u32 %v1324, 7
        %v1326 = vsub.s32 %v1323, %v1325
        %v1327 = vrot.slane %v1313, %v1326
        %v1328 = vcombine.low %v1304, %v1320
        %v1329 = vcombine.high %v1304, %v1320
        %v1331 = vunpack.c.l.s4 1934713408
        %v1332 = vunpack.c.0.s8 %v1331
        %v1333 = vlaneseq
        %v1334 = vshrl.u32 %v1333, 7
        %v1335 = vsub.s32 %v1332, %v1334
        %v1336 = vrot.slane %v1328, %v1335
        %v1338 = vunpack.c.l.s4 1934713408
        %v1339 = vunpack.c.0.s8 %v1338
        %v1340 = vlaneseq
        %v1341 = vshrl.u32 %v1340, 7
        %v1342 = vsub.s32 %v1339, %v1341
        %v1343 = vrot.slane %v1329, %v1342
        %v1344 = vcombine.low %v1311, %v1327
        %v1345 = vcombine.high %v1311, %v1327
        %v1347 = vunpack.c.l.s4 1934713408
        %v1348 = vunpack.c.0.s8 %v1347
        %v1349 = vlaneseq
        %v1350 = vshrl.u32 %v1349, 7
        %v1351 = vsub.s32 %v1348, %v1350
        %v1352 = vrot.slane %v1344, %v1351
        %v1354 = vunpack.c.l.s4 1934713408
        %v1355 = vunpack.c.0.s8 %v1354
        %v1356 = vlaneseq
        %v1357 = vshrl.u32 %v1356, 7
        %v1358 = vsub.s32 %v1355, %v1357
        %v1359 = vrot.slane %v1345, %v1358
        %v1360 = vcombine.high %v1336, 0.0
        %v1361 = vcombine.high %v1343, 0.0
        %v1362 = vcombine.high %v1352, 0.0
        %v1363 = vcombine.high %v1359, 0.0
        %1365 = vrot.lane.b32.xlu0 %v1292, 16
        %v1366 = vpop.permute.xlu0 %1365
        %1369 = vrot.lane.b32.xlu0 %v1275, 32
        %v1370 = vpop.permute.xlu0 %1369
        %1373 = vrot.lane.b32.xlu0 %v1293, 48
        %v1374 = vpop.permute.xlu0 %1373
        %1377 = vrot.lane.b32.xlu0 %v1284, 64
        %v1378 = vpop.permute.xlu0 %1377
        %1381 = vrot.lane.b32.xlu0 %v1294, 80
        %v1382 = vpop.permute.xlu0 %1381
        %1385 = vrot.lane.b32.xlu0 %v1291, 96
        %v1386 = vpop.permute.xlu0 %1385
        %1389 = vrot.lane.b32.xlu0 %v1295, 112
        %v1390 = vpop.permute.xlu0 %1389
        %1393 = vrot.lane.b32.xlu0 %v1360, 16
        %v1394 = vpop.permute.xlu0 %1393
        %1397 = vrot.lane.b32.xlu0 %v1343, 32
        %v1398 = vpop.permute.xlu0 %1397
        %1401 = vrot.lane.b32.xlu0 %v1361, 48
        %v1402 = vpop.permute.xlu0 %1401
        %1405 = vrot.lane.b32.xlu0 %v1352, 64
        %v1406 = vpop.permute.xlu0 %1405
        %1409 = vrot.lane.b32.xlu0 %v1362, 80
        %v1410 = vpop.permute.xlu0 %1409
        %1413 = vrot.lane.b32.xlu0 %v1359, 96
        %v1414 = vpop.permute.xlu0 %1413
        %1417 = vrot.lane.b32.xlu0 %v1363, 112
        %v1418 = vpop.permute.xlu0 %1417
        %v1420 = vsel %vm480, %v1268, %v1366
        %v1421 = vsel %vm482, %v1420, %v1370
        %v1422 = vsel %vm484, %v1421, %v1374
        %v1423 = vsel %vm486, %v1422, %v1378
        %v1424 = vsel %vm488, %v1423, %v1382
        %v1425 = vsel %vm490, %v1424, %v1386
        %v1426 = vsel %vm492, %v1425, %v1390
        %v1427 = vsel %vm480, %v1336, %v1394
        %v1428 = vsel %vm482, %v1427, %v1398
        %v1429 = vsel %vm484, %v1428, %v1402
        %v1430 = vsel %vm486, %v1429, %v1406
        %v1431 = vsel %vm488, %v1430, %v1410
        %v1432 = vsel %vm490, %v1431, %v1414
        %v1433 = vsel %vm492, %v1432, %v1418
        %1434 = vrot.lane.b32.xlu0 %v972, 126
        %v1435 = vpop.permute.xlu0 %1434
        %1436 = vrot.lane.b32.xlu0 %v974, 126
        %v1437 = vpop.permute.xlu0 %1436
        %1438 = vrot.lane.b32.xlu0 %v977, 126
        %v1439 = vpop.permute.xlu0 %1438
        %1440 = vrot.lane.b32.xlu0 %v979, 126
        %v1441 = vpop.permute.xlu0 %1440
        %1442 = vrot.lane.b32.xlu0 %v982, 126
        %v1443 = vpop.permute.xlu0 %1442
        %1444 = vrot.lane.b32.xlu0 %v984, 126
        %v1445 = vpop.permute.xlu0 %1444
        %1446 = vrot.lane.b32.xlu0 %v987, 126
        %v1447 = vpop.permute.xlu0 %1446
        %1448 = vrot.lane.b32.xlu0 %v989, 126
        %v1449 = vpop.permute.xlu0 %1448
        %v1458 = vcombine.low %v1435, %v1443
        %v1459 = vcombine.high %v1435, %v1443
        %v1461 = vunpack.c.l.s4 1983009808
        %v1462 = vunpack.c.0.s8 %v1461
        %v1463 = vlaneseq
        %v1464 = vshrl.u32 %v1463, 7
        %v1465 = vsub.s32 %v1462, %v1464
        %v1466 = vrot.slane %v1458, %v1465
        %v1468 = vunpack.c.l.s4 1983009808
        %v1469 = vunpack.c.0.s8 %v1468
        %v1470 = vlaneseq
        %v1471 = vshrl.u32 %v1470, 7
        %v1472 = vsub.s32 %v1469, %v1471
        %v1473 = vrot.slane %v1459, %v1472
        %v1474 = vcombine.low %v1439, %v1447
        %v1475 = vcombine.high %v1439, %v1447
        %v1477 = vunpack.c.l.s4 1983009808
        %v1478 = vunpack.c.0.s8 %v1477
        %v1479 = vlaneseq
        %v1480 = vshrl.u32 %v1479, 7
        %v1481 = vsub.s32 %v1478, %v1480
        %v1482 = vrot.slane %v1474, %v1481
        %v1484 = vunpack.c.l.s4 1983009808
        %v1485 = vunpack.c.0.s8 %v1484
        %v1486 = vlaneseq
        %v1487 = vshrl.u32 %v1486, 7
        %v1488 = vsub.s32 %v1485, %v1487
        %v1489 = vrot.slane %v1475, %v1488
        %v1490 = vcombine.low %v1466, %v1482
        %v1491 = vcombine.high %v1466, %v1482
        %v1493 = vunpack.c.l.s4 1934713408
        %v1494 = vunpack.c.0.s8 %v1493
        %v1495 = vlaneseq
        %v1496 = vshrl.u32 %v1495, 7
        %v1497 = vsub.s32 %v1494, %v1496
        %v1498 = vrot.slane %v1490, %v1497
        %v1500 = vunpack.c.l.s4 1934713408
        %v1501 = vunpack.c.0.s8 %v1500
        %v1502 = vlaneseq
        %v1503 = vshrl.u32 %v1502, 7
        %v1504 = vsub.s32 %v1501, %v1503
        %v1505 = vrot.slane %v1491, %v1504
        %v1506 = vcombine.low %v1473, %v1489
        %v1507 = vcombine.high %v1473, %v1489
        %v1509 = vunpack.c.l.s4 1934713408
        %v1510 = vunpack.c.0.s8 %v1509
        %v1511 = vlaneseq
        %v1512 = vshrl.u32 %v1511, 7
        %v1513 = vsub.s32 %v1510, %v1512
        %v1514 = vrot.slane %v1506, %v1513
        %v1516 = vunpack.c.l.s4 1934713408
        %v1517 = vunpack.c.0.s8 %v1516
        %v1518 = vlaneseq
        %v1519 = vshrl.u32 %v1518, 7
        %v1520 = vsub.s32 %v1517, %v1519
        %v1521 = vrot.slane %v1507, %v1520
        %v1522 = vcombine.high %v1498, 0.0
        %v1523 = vcombine.high %v1505, 0.0
        %v1524 = vcombine.high %v1514, 0.0
        %v1525 = vcombine.high %v1521, 0.0
        %v1526 = vcombine.low %v1437, %v1445
        %v1527 = vcombine.high %v1437, %v1445
        %v1529 = vunpack.c.l.s4 1983009808
        %v1530 = vunpack.c.0.s8 %v1529
        %v1531 = vlaneseq
        %v1532 = vshrl.u32 %v1531, 7
        %v1533 = vsub.s32 %v1530, %v1532
        %v1534 = vrot.slane %v1526, %v1533
        %v1536 = vunpack.c.l.s4 1983009808
        %v1537 = vunpack.c.0.s8 %v1536
        %v1538 = vlaneseq
        %v1539 = vshrl.u32 %v1538, 7
        %v1540 = vsub.s32 %v1537, %v1539
        %v1541 = vrot.slane %v1527, %v1540
        %v1542 = vcombine.low %v1441, %v1449
        %v1543 = vcombine.high %v1441, %v1449
        %v1545 = vunpack.c.l.s4 1983009808
        %v1546 = vunpack.c.0.s8 %v1545
        %v1547 = vlaneseq
        %v1548 = vshrl.u32 %v1547, 7
        %v1549 = vsub.s32 %v1546, %v1548
        %v1550 = vrot.slane %v1542, %v1549
        %v1552 = vunpack.c.l.s4 1983009808
        %v1553 = vunpack.c.0.s8 %v1552
        %v1554 = vlaneseq
        %v1555 = vshrl.u32 %v1554, 7
        %v1556 = vsub.s32 %v1553, %v1555
        %v1557 = vrot.slane %v1543, %v1556
        %v1558 = vcombine.low %v1534, %v1550
        %v1559 = vcombine.high %v1534, %v1550
        %v1561 = vunpack.c.l.s4 1934713408
        %v1562 = vunpack.c.0.s8 %v1561
        %v1563 = vlaneseq
        %v1564 = vshrl.u32 %v1563, 7
        %v1565 = vsub.s32 %v1562, %v1564
        %v1566 = vrot.slane %v1558, %v1565
        %v1568 = vunpack.c.l.s4 1934713408
        %v1569 = vunpack.c.0.s8 %v1568
        %v1570 = vlaneseq
        %v1571 = vshrl.u32 %v1570, 7
        %v1572 = vsub.s32 %v1569, %v1571
        %v1573 = vrot.slane %v1559, %v1572
        %v1574 = vcombine.low %v1541, %v1557
        %v1575 = vcombine.high %v1541, %v1557
        %v1577 = vunpack.c.l.s4 1934713408
        %v1578 = vunpack.c.0.s8 %v1577
        %v1579 = vlaneseq
        %v1580 = vshrl.u32 %v1579, 7
        %v1581 = vsub.s32 %v1578, %v1580
        %v1582 = vrot.slane %v1574, %v1581
        %v1584 = vunpack.c.l.s4 1934713408
        %v1585 = vunpack.c.0.s8 %v1584
        %v1586 = vlaneseq
        %v1587 = vshrl.u32 %v1586, 7
        %v1588 = vsub.s32 %v1585, %v1587
        %v1589 = vrot.slane %v1575, %v1588
        %v1590 = vcombine.high %v1566, 0.0
        %v1591 = vcombine.high %v1573, 0.0
        %v1592 = vcombine.high %v1582, 0.0
        %v1593 = vcombine.high %v1589, 0.0
        %1595 = vrot.lane.b32.xlu0 %v1522, 16
        %v1596 = vpop.permute.xlu0 %1595
        %1599 = vrot.lane.b32.xlu0 %v1505, 32
        %v1600 = vpop.permute.xlu0 %1599
        %1603 = vrot.lane.b32.xlu0 %v1523, 48
        %v1604 = vpop.permute.xlu0 %1603
        %1607 = vrot.lane.b32.xlu0 %v1514, 64
        %v1608 = vpop.permute.xlu0 %1607
        %1611 = vrot.lane.b32.xlu0 %v1524, 80
        %v1612 = vpop.permute.xlu0 %1611
        %1615 = vrot.lane.b32.xlu0 %v1521, 96
        %v1616 = vpop.permute.xlu0 %1615
        %1619 = vrot.lane.b32.xlu0 %v1525, 112
        %v1620 = vpop.permute.xlu0 %1619
        %1623 = vrot.lane.b32.xlu0 %v1590, 16
        %v1624 = vpop.permute.xlu0 %1623
        %1627 = vrot.lane.b32.xlu0 %v1573, 32
        %v1628 = vpop.permute.xlu0 %1627
        %1631 = vrot.lane.b32.xlu0 %v1591, 48
        %v1632 = vpop.permute.xlu0 %1631
        %1635 = vrot.lane.b32.xlu0 %v1582, 64
        %v1636 = vpop.permute.xlu0 %1635
        %1639 = vrot.lane.b32.xlu0 %v1592, 80
        %v1640 = vpop.permute.xlu0 %1639
        %1643 = vrot.lane.b32.xlu0 %v1589, 96
        %v1644 = vpop.permute.xlu0 %1643
        %1647 = vrot.lane.b32.xlu0 %v1593, 112
        %v1648 = vpop.permute.xlu0 %1647
        %v1650 = vsel %vm480, %v1498, %v1596
        %v1651 = vsel %vm482, %v1650, %v1600
        %v1652 = vsel %vm484, %v1651, %v1604
        %v1653 = vsel %vm486, %v1652, %v1608
        %v1654 = vsel %vm488, %v1653, %v1612
        %v1655 = vsel %vm490, %v1654, %v1616
        %v1656 = vsel %vm492, %v1655, %v1620
        %v1657 = vsel %vm480, %v1566, %v1624
        %v1658 = vsel %vm482, %v1657, %v1628
        %v1659 = vsel %vm484, %v1658, %v1632
        %v1660 = vsel %vm486, %v1659, %v1636
        %v1661 = vsel %vm488, %v1660, %v1640
        %v1662 = vsel %vm490, %v1661, %v1644
        %v1663 = vsel %vm492, %v1662, %v1648
        %vm1664 = vcmask 1045504
        %v1665 = vrot.slane %v280, 2
        %v1666 = vrot.slane %v258, 2
        %v1667 = vsel %vm1664, %v1665, %v1666
        %v1668 = vrot.slane %v284, 2
        %v1669 = vsel %vm1664, %v1666, %v1668
        %v1670 = vrot.slane %v281, 2
        %v1671 = vrot.slane %v261, 2
        %v1672 = vsel %vm1664, %v1670, %v1671
        %v1673 = vrot.slane %v285, 2
        %v1674 = vsel %vm1664, %v1671, %v1673
        %v1675 = vrot.slane %v282, 2
        %v1676 = vrot.slane %v264, 2
        %v1677 = vsel %vm1664, %v1675, %v1676
        %v1678 = vrot.slane %v286, 2
        %v1679 = vsel %vm1664, %v1676, %v1678
        %v1680 = vrot.slane %v283, 2
        %v1681 = vrot.slane %v267, 2
        %v1682 = vsel %vm1664, %v1680, %v1681
        %v1683 = vrot.slane %v287, 2
        %v1684 = vsel %vm1664, %v1681, %v1683
        %v1693 = vcombine.low %v1667, %v1677
        %v1694 = vcombine.high %v1667, %v1677
        %v1696 = vunpack.c.l.s4 1983009808
        %v1697 = vunpack.c.0.s8 %v1696
        %v1698 = vlaneseq
        %v1699 = vshrl.u32 %v1698, 7
        %v1700 = vsub.s32 %v1697, %v1699
        %v1701 = vrot.slane %v1693, %v1700
        %v1703 = vunpack.c.l.s4 1983009808
        %v1704 = vunpack.c.0.s8 %v1703
        %v1705 = vlaneseq
        %v1706 = vshrl.u32 %v1705, 7
        %v1707 = vsub.s32 %v1704, %v1706
        %v1708 = vrot.slane %v1694, %v1707
        %v1709 = vcombine.low %v1672, %v1682
        %v1710 = vcombine.high %v1672, %v1682
        %v1712 = vunpack.c.l.s4 1983009808
        %v1713 = vunpack.c.0.s8 %v1712
        %v1714 = vlaneseq
        %v1715 = vshrl.u32 %v1714, 7
        %v1716 = vsub.s32 %v1713, %v1715
        %v1717 = vrot.slane %v1709, %v1716
        %v1719 = vunpack.c.l.s4 1983009808
        %v1720 = vunpack.c.0.s8 %v1719
        %v1721 = vlaneseq
        %v1722 = vshrl.u32 %v1721, 7
        %v1723 = vsub.s32 %v1720, %v1722
        %v1724 = vrot.slane %v1710, %v1723
        %v1725 = vcombine.low %v1701, %v1717
        %v1726 = vcombine.high %v1701, %v1717
        %v1728 = vunpack.c.l.s4 1934713408
        %v1729 = vunpack.c.0.s8 %v1728
        %v1730 = vlaneseq
        %v1731 = vshrl.u32 %v1730, 7
        %v1732 = vsub.s32 %v1729, %v1731
        %v1733 = vrot.slane %v1725, %v1732
        %v1735 = vunpack.c.l.s4 1934713408
        %v1736 = vunpack.c.0.s8 %v1735
        %v1737 = vlaneseq
        %v1738 = vshrl.u32 %v1737, 7
        %v1739 = vsub.s32 %v1736, %v1738
        %v1740 = vrot.slane %v1726, %v1739
        %v1741 = vcombine.low %v1708, %v1724
        %v1742 = vcombine.high %v1708, %v1724
        %v1744 = vunpack.c.l.s4 1934713408
        %v1745 = vunpack.c.0.s8 %v1744
        %v1746 = vlaneseq
        %v1747 = vshrl.u32 %v1746, 7
        %v1748 = vsub.s32 %v1745, %v1747
        %v1749 = vrot.slane %v1741, %v1748
        %v1751 = vunpack.c.l.s4 1934713408
        %v1752 = vunpack.c.0.s8 %v1751
        %v1753 = vlaneseq
        %v1754 = vshrl.u32 %v1753, 7
        %v1755 = vsub.s32 %v1752, %v1754
        %v1756 = vrot.slane %v1742, %v1755
        %v1757 = vcombine.high %v1733, 0.0
        %v1758 = vcombine.high %v1740, 0.0
        %v1759 = vcombine.high %v1749, 0.0
        %v1760 = vcombine.high %v1756, 0.0
        %v1761 = vcombine.low %v1669, %v1679
        %v1762 = vcombine.high %v1669, %v1679
        %v1764 = vunpack.c.l.s4 1983009808
        %v1765 = vunpack.c.0.s8 %v1764
        %v1766 = vlaneseq
        %v1767 = vshrl.u32 %v1766, 7
        %v1768 = vsub.s32 %v1765, %v1767
        %v1769 = vrot.slane %v1761, %v1768
        %v1771 = vunpack.c.l.s4 1983009808
        %v1772 = vunpack.c.0.s8 %v1771
        %v1773 = vlaneseq
        %v1774 = vshrl.u32 %v1773, 7
        %v1775 = vsub.s32 %v1772, %v1774
        %v1776 = vrot.slane %v1762, %v1775
        %v1777 = vcombine.low %v1674, %v1684
        %v1778 = vcombine.high %v1674, %v1684
        %v1780 = vunpack.c.l.s4 1983009808
        %v1781 = vunpack.c.0.s8 %v1780
        %v1782 = vlaneseq
        %v1783 = vshrl.u32 %v1782, 7
        %v1784 = vsub.s32 %v1781, %v1783
        %v1785 = vrot.slane %v1777, %v1784
        %v1787 = vunpack.c.l.s4 1983009808
        %v1788 = vunpack.c.0.s8 %v1787
        %v1789 = vlaneseq
        %v1790 = vshrl.u32 %v1789, 7
        %v1791 = vsub.s32 %v1788, %v1790
        %v1792 = vrot.slane %v1778, %v1791
        %v1793 = vcombine.low %v1769, %v1785
        %v1794 = vcombine.high %v1769, %v1785
        %v1796 = vunpack.c.l.s4 1934713408
        %v1797 = vunpack.c.0.s8 %v1796
        %v1798 = vlaneseq
        %v1799 = vshrl.u32 %v1798, 7
        %v1800 = vsub.s32 %v1797, %v1799
        %v1801 = vrot.slane %v1793, %v1800
        %v1803 = vunpack.c.l.s4 1934713408
        %v1804 = vunpack.c.0.s8 %v1803
        %v1805 = vlaneseq
        %v1806 = vshrl.u32 %v1805, 7
        %v1807 = vsub.s32 %v1804, %v1806
        %v1808 = vrot.slane %v1794, %v1807
        %v1809 = vcombine.low %v1776, %v1792
        %v1810 = vcombine.high %v1776, %v1792
        %v1812 = vunpack.c.l.s4 1934713408
        %v1813 = vunpack.c.0.s8 %v1812
        %v1814 = vlaneseq
        %v1815 = vshrl.u32 %v1814, 7
        %v1816 = vsub.s32 %v1813, %v1815
        %v1817 = vrot.slane %v1809, %v1816
        %v1819 = vunpack.c.l.s4 1934713408
        %v1820 = vunpack.c.0.s8 %v1819
        %v1821 = vlaneseq
        %v1822 = vshrl.u32 %v1821, 7
        %v1823 = vsub.s32 %v1820, %v1822
        %v1824 = vrot.slane %v1810, %v1823
        %v1825 = vcombine.high %v1801, 0.0
        %v1826 = vcombine.high %v1808, 0.0
        %v1827 = vcombine.high %v1817, 0.0
        %v1828 = vcombine.high %v1824, 0.0
        %1830 = vrot.lane.b32.xlu0 %v1757, 16
        %v1831 = vpop.permute.xlu0 %1830
        %1834 = vrot.lane.b32.xlu0 %v1740, 32
        %v1835 = vpop.permute.xlu0 %1834
        %1838 = vrot.lane.b32.xlu0 %v1758, 48
        %v1839 = vpop.permute.xlu0 %1838
        %1842 = vrot.lane.b32.xlu0 %v1749, 64
        %v1843 = vpop.permute.xlu0 %1842
        %1846 = vrot.lane.b32.xlu0 %v1759, 80
        %v1847 = vpop.permute.xlu0 %1846
        %1850 = vrot.lane.b32.xlu0 %v1756, 96
        %v1851 = vpop.permute.xlu0 %1850
        %1854 = vrot.lane.b32.xlu0 %v1760, 112
        %v1855 = vpop.permute.xlu0 %1854
        %1858 = vrot.lane.b32.xlu0 %v1825, 16
        %v1859 = vpop.permute.xlu0 %1858
        %1862 = vrot.lane.b32.xlu0 %v1808, 32
        %v1863 = vpop.permute.xlu0 %1862
        %1866 = vrot.lane.b32.xlu0 %v1826, 48
        %v1867 = vpop.permute.xlu0 %1866
        %1870 = vrot.lane.b32.xlu0 %v1817, 64
        %v1871 = vpop.permute.xlu0 %1870
        %1874 = vrot.lane.b32.xlu0 %v1827, 80
        %v1875 = vpop.permute.xlu0 %1874
        %1878 = vrot.lane.b32.xlu0 %v1824, 96
        %v1879 = vpop.permute.xlu0 %1878
        %1882 = vrot.lane.b32.xlu0 %v1828, 112
        %v1883 = vpop.permute.xlu0 %1882
        %v1885 = vsel %vm480, %v1733, %v1831
        %v1886 = vsel %vm482, %v1885, %v1835
        %v1887 = vsel %vm484, %v1886, %v1839
        %v1888 = vsel %vm486, %v1887, %v1843
        %v1889 = vsel %vm488, %v1888, %v1847
        %v1890 = vsel %vm490, %v1889, %v1851
        %v1891 = vsel %vm492, %v1890, %v1855
        %v1892 = vsel %vm480, %v1801, %v1859
        %v1893 = vsel %vm482, %v1892, %v1863
        %v1894 = vsel %vm484, %v1893, %v1867
        %v1895 = vsel %vm486, %v1894, %v1871
        %v1896 = vsel %vm488, %v1895, %v1875
        %v1897 = vsel %vm490, %v1896, %v1879
        %v1898 = vsel %vm492, %v1897, %v1883
        %1899 = vrot.lane.b32.xlu0 %v1667, 127
        %v1900 = vpop.permute.xlu0 %1899
        %1901 = vrot.lane.b32.xlu0 %v1669, 127
        %v1902 = vpop.permute.xlu0 %1901
        %1903 = vrot.lane.b32.xlu0 %v1672, 127
        %v1904 = vpop.permute.xlu0 %1903
        %1905 = vrot.lane.b32.xlu0 %v1674, 127
        %v1906 = vpop.permute.xlu0 %1905
        %1907 = vrot.lane.b32.xlu0 %v1677, 127
        %v1908 = vpop.permute.xlu0 %1907
        %1909 = vrot.lane.b32.xlu0 %v1679, 127
        %v1910 = vpop.permute.xlu0 %1909
        %1911 = vrot.lane.b32.xlu0 %v1682, 127
        %v1912 = vpop.permute.xlu0 %1911
        %1913 = vrot.lane.b32.xlu0 %v1684, 127
        %v1914 = vpop.permute.xlu0 %1913
        %v1923 = vcombine.low %v1900, %v1908
        %v1924 = vcombine.high %v1900, %v1908
        %v1926 = vunpack.c.l.s4 1983009808
        %v1927 = vunpack.c.0.s8 %v1926
        %v1928 = vlaneseq
        %v1929 = vshrl.u32 %v1928, 7
        %v1930 = vsub.s32 %v1927, %v1929
        %v1931 = vrot.slane %v1923, %v1930
        %v1933 = vunpack.c.l.s4 1983009808
        %v1934 = vunpack.c.0.s8 %v1933
        %v1935 = vlaneseq
        %v1936 = vshrl.u32 %v1935, 7
        %v1937 = vsub.s32 %v1934, %v1936
        %v1938 = vrot.slane %v1924, %v1937
        %v1939 = vcombine.low %v1904, %v1912
        %v1940 = vcombine.high %v1904, %v1912
        %v1942 = vunpack.c.l.s4 1983009808
        %v1943 = vunpack.c.0.s8 %v1942
        %v1944 = vlaneseq
        %v1945 = vshrl.u32 %v1944, 7
        %v1946 = vsub.s32 %v1943, %v1945
        %v1947 = vrot.slane %v1939, %v1946
        %v1949 = vunpack.c.l.s4 1983009808
        %v1950 = vunpack.c.0.s8 %v1949
        %v1951 = vlaneseq
        %v1952 = vshrl.u32 %v1951, 7
        %v1953 = vsub.s32 %v1950, %v1952
        %v1954 = vrot.slane %v1940, %v1953
        %v1955 = vcombine.low %v1931, %v1947
        %v1956 = vcombine.high %v1931, %v1947
        %v1958 = vunpack.c.l.s4 1934713408
        %v1959 = vunpack.c.0.s8 %v1958
        %v1960 = vlaneseq
        %v1961 = vshrl.u32 %v1960, 7
        %v1962 = vsub.s32 %v1959, %v1961
        %v1963 = vrot.slane %v1955, %v1962
        %v1965 = vunpack.c.l.s4 1934713408
        %v1966 = vunpack.c.0.s8 %v1965
        %v1967 = vlaneseq
        %v1968 = vshrl.u32 %v1967, 7
        %v1969 = vsub.s32 %v1966, %v1968
        %v1970 = vrot.slane %v1956, %v1969
        %v1971 = vcombine.low %v1938, %v1954
        %v1972 = vcombine.high %v1938, %v1954
        %v1974 = vunpack.c.l.s4 1934713408
        %v1975 = vunpack.c.0.s8 %v1974
        %v1976 = vlaneseq
        %v1977 = vshrl.u32 %v1976, 7
        %v1978 = vsub.s32 %v1975, %v1977
        %v1979 = vrot.slane %v1971, %v1978
        %v1981 = vunpack.c.l.s4 1934713408
        %v1982 = vunpack.c.0.s8 %v1981
        %v1983 = vlaneseq
        %v1984 = vshrl.u32 %v1983, 7
        %v1985 = vsub.s32 %v1982, %v1984
        %v1986 = vrot.slane %v1972, %v1985
        %v1987 = vcombine.high %v1963, 0.0
        %v1988 = vcombine.high %v1970, 0.0
        %v1989 = vcombine.high %v1979, 0.0
        %v1990 = vcombine.high %v1986, 0.0
        %v1991 = vcombine.low %v1902, %v1910
        %v1992 = vcombine.high %v1902, %v1910
        %v1994 = vunpack.c.l.s4 1983009808
        %v1995 = vunpack.c.0.s8 %v1994
        %v1996 = vlaneseq
        %v1997 = vshrl.u32 %v1996, 7
        %v1998 = vsub.s32 %v1995, %v1997
        %v1999 = vrot.slane %v1991, %v1998
        %v2001 = vunpack.c.l.s4 1983009808
        %v2002 = vunpack.c.0.s8 %v2001
        %v2003 = vlaneseq
        %v2004 = vshrl.u32 %v2003, 7
        %v2005 = vsub.s32 %v2002, %v2004
        %v2006 = vrot.slane %v1992, %v2005
        %v2007 = vcombine.low %v1906, %v1914
        %v2008 = vcombine.high %v1906, %v1914
        %v2010 = vunpack.c.l.s4 1983009808
        %v2011 = vunpack.c.0.s8 %v2010
        %v2012 = vlaneseq
        %v2013 = vshrl.u32 %v2012, 7
        %v2014 = vsub.s32 %v2011, %v2013
        %v2015 = vrot.slane %v2007, %v2014
        %v2017 = vunpack.c.l.s4 1983009808
        %v2018 = vunpack.c.0.s8 %v2017
        %v2019 = vlaneseq
        %v2020 = vshrl.u32 %v2019, 7
        %v2021 = vsub.s32 %v2018, %v2020
        %v2022 = vrot.slane %v2008, %v2021
        %v2023 = vcombine.low %v1999, %v2015
        %v2024 = vcombine.high %v1999, %v2015
        %v2026 = vunpack.c.l.s4 1934713408
        %v2027 = vunpack.c.0.s8 %v2026
        %v2028 = vlaneseq
        %v2029 = vshrl.u32 %v2028, 7
        %v2030 = vsub.s32 %v2027, %v2029
        %v2031 = vrot.slane %v2023, %v2030
        %v2033 = vunpack.c.l.s4 1934713408
        %v2034 = vunpack.c.0.s8 %v2033
        %v2035 = vlaneseq
        %v2036 = vshrl.u32 %v2035, 7
        %v2037 = vsub.s32 %v2034, %v2036
        %v2038 = vrot.slane %v2024, %v2037
        %v2039 = vcombine.low %v2006, %v2022
        %v2040 = vcombine.high %v2006, %v2022
        %v2042 = vunpack.c.l.s4 1934713408
        %v2043 = vunpack.c.0.s8 %v2042
        %v2044 = vlaneseq
        %v2045 = vshrl.u32 %v2044, 7
        %v2046 = vsub.s32 %v2043, %v2045
        %v2047 = vrot.slane %v2039, %v2046
        %v2049 = vunpack.c.l.s4 1934713408
        %v2050 = vunpack.c.0.s8 %v2049
        %v2051 = vlaneseq
        %v2052 = vshrl.u32 %v2051, 7
        %v2053 = vsub.s32 %v2050, %v2052
        %v2054 = vrot.slane %v2040, %v2053
        %v2055 = vcombine.high %v2031, 0.0
        %v2056 = vcombine.high %v2038, 0.0
        %v2057 = vcombine.high %v2047, 0.0
        %v2058 = vcombine.high %v2054, 0.0
        %2060 = vrot.lane.b32.xlu0 %v1987, 16
        %v2061 = vpop.permute.xlu0 %2060
        %2064 = vrot.lane.b32.xlu0 %v1970, 32
        %v2065 = vpop.permute.xlu0 %2064
        %2068 = vrot.lane.b32.xlu0 %v1988, 48
        %v2069 = vpop.permute.xlu0 %2068
        %2072 = vrot.lane.b32.xlu0 %v1979, 64
        %v2073 = vpop.permute.xlu0 %2072
        %2076 = vrot.lane.b32.xlu0 %v1989, 80
        %v2077 = vpop.permute.xlu0 %2076
        %2080 = vrot.lane.b32.xlu0 %v1986, 96
        %v2081 = vpop.permute.xlu0 %2080
        %2084 = vrot.lane.b32.xlu0 %v1990, 112
        %v2085 = vpop.permute.xlu0 %2084
        %2088 = vrot.lane.b32.xlu0 %v2055, 16
        %v2089 = vpop.permute.xlu0 %2088
        %2092 = vrot.lane.b32.xlu0 %v2038, 32
        %v2093 = vpop.permute.xlu0 %2092
        %2096 = vrot.lane.b32.xlu0 %v2056, 48
        %v2097 = vpop.permute.xlu0 %2096
        %2100 = vrot.lane.b32.xlu0 %v2047, 64
        %v2101 = vpop.permute.xlu0 %2100
        %2104 = vrot.lane.b32.xlu0 %v2057, 80
        %v2105 = vpop.permute.xlu0 %2104
        %2108 = vrot.lane.b32.xlu0 %v2054, 96
        %v2109 = vpop.permute.xlu0 %2108
        %2112 = vrot.lane.b32.xlu0 %v2058, 112
        %v2113 = vpop.permute.xlu0 %2112
        %v2115 = vsel %vm480, %v1963, %v2061
        %v2116 = vsel %vm482, %v2115, %v2065
        %v2117 = vsel %vm484, %v2116, %v2069
        %v2118 = vsel %vm486, %v2117, %v2073
        %v2119 = vsel %vm488, %v2118, %v2077
        %v2120 = vsel %vm490, %v2119, %v2081
        %v2121 = vsel %vm492, %v2120, %v2085
        %v2122 = vsel %vm480, %v2031, %v2089
        %v2123 = vsel %vm482, %v2122, %v2093
        %v2124 = vsel %vm484, %v2123, %v2097
        %v2125 = vsel %vm486, %v2124, %v2101
        %v2126 = vsel %vm488, %v2125, %v2105
        %v2127 = vsel %vm490, %v2126, %v2109
        %v2128 = vsel %vm492, %v2127, %v2113
        %2129 = vrot.lane.b32.xlu0 %v1667, 126
        %v2130 = vpop.permute.xlu0 %2129
        %2131 = vrot.lane.b32.xlu0 %v1669, 126
        %v2132 = vpop.permute.xlu0 %2131
        %2133 = vrot.lane.b32.xlu0 %v1672, 126
        %v2134 = vpop.permute.xlu0 %2133
        %2135 = vrot.lane.b32.xlu0 %v1674, 126
        %v2136 = vpop.permute.xlu0 %2135
        %2137 = vrot.lane.b32.xlu0 %v1677, 126
        %v2138 = vpop.permute.xlu0 %2137
        %2139 = vrot.lane.b32.xlu0 %v1679, 126
        %v2140 = vpop.permute.xlu0 %2139
        %2141 = vrot.lane.b32.xlu0 %v1682, 126
        %v2142 = vpop.permute.xlu0 %2141
        %2143 = vrot.lane.b32.xlu0 %v1684, 126
        %v2144 = vpop.permute.xlu0 %2143
        %v2153 = vcombine.low %v2130, %v2138
        %v2154 = vcombine.high %v2130, %v2138
        %v2156 = vunpack.c.l.s4 1983009808
        %v2157 = vunpack.c.0.s8 %v2156
        %v2158 = vlaneseq
        %v2159 = vshrl.u32 %v2158, 7
        %v2160 = vsub.s32 %v2157, %v2159
        %v2161 = vrot.slane %v2153, %v2160
        %v2163 = vunpack.c.l.s4 1983009808
        %v2164 = vunpack.c.0.s8 %v2163
        %v2165 = vlaneseq
        %v2166 = vshrl.u32 %v2165, 7
        %v2167 = vsub.s32 %v2164, %v2166
        %v2168 = vrot.slane %v2154, %v2167
        %v2169 = vcombine.low %v2134, %v2142
        %v2170 = vcombine.high %v2134, %v2142
        %v2172 = vunpack.c.l.s4 1983009808
        %v2173 = vunpack.c.0.s8 %v2172
        %v2174 = vlaneseq
        %v2175 = vshrl.u32 %v2174, 7
        %v2176 = vsub.s32 %v2173, %v2175
        %v2177 = vrot.slane %v2169, %v2176
        %v2179 = vunpack.c.l.s4 1983009808
        %v2180 = vunpack.c.0.s8 %v2179
        %v2181 = vlaneseq
        %v2182 = vshrl.u32 %v2181, 7
        %v2183 = vsub.s32 %v2180, %v2182
        %v2184 = vrot.slane %v2170, %v2183
        %v2185 = vcombine.low %v2161, %v2177
        %v2186 = vcombine.high %v2161, %v2177
        %v2188 = vunpack.c.l.s4 1934713408
        %v2189 = vunpack.c.0.s8 %v2188
        %v2190 = vlaneseq
        %v2191 = vshrl.u32 %v2190, 7
        %v2192 = vsub.s32 %v2189, %v2191
        %v2193 = vrot.slane %v2185, %v2192
        %v2195 = vunpack.c.l.s4 1934713408
        %v2196 = vunpack.c.0.s8 %v2195
        %v2197 = vlaneseq
        %v2198 = vshrl.u32 %v2197, 7
        %v2199 = vsub.s32 %v2196, %v2198
        %v2200 = vrot.slane %v2186, %v2199
        %v2201 = vcombine.low %v2168, %v2184
        %v2202 = vcombine.high %v2168, %v2184
        %v2204 = vunpack.c.l.s4 1934713408
        %v2205 = vunpack.c.0.s8 %v2204
        %v2206 = vlaneseq
        %v2207 = vshrl.u32 %v2206, 7
        %v2208 = vsub.s32 %v2205, %v2207
        %v2209 = vrot.slane %v2201, %v2208
        %v2211 = vunpack.c.l.s4 1934713408
        %v2212 = vunpack.c.0.s8 %v2211
        %v2213 = vlaneseq
        %v2214 = vshrl.u32 %v2213, 7
        %v2215 = vsub.s32 %v2212, %v2214
        %v2216 = vrot.slane %v2202, %v2215
        %v2217 = vcombine.high %v2193, 0.0
        %v2218 = vcombine.high %v2200, 0.0
        %v2219 = vcombine.high %v2209, 0.0
        %v2220 = vcombine.high %v2216, 0.0
        %v2221 = vcombine.low %v2132, %v2140
        %v2222 = vcombine.high %v2132, %v2140
        %v2224 = vunpack.c.l.s4 1983009808
        %v2225 = vunpack.c.0.s8 %v2224
        %v2226 = vlaneseq
        %v2227 = vshrl.u32 %v2226, 7
        %v2228 = vsub.s32 %v2225, %v2227
        %v2229 = vrot.slane %v2221, %v2228
        %v2231 = vunpack.c.l.s4 1983009808
        %v2232 = vunpack.c.0.s8 %v2231
        %v2233 = vlaneseq
        %v2234 = vshrl.u32 %v2233, 7
        %v2235 = vsub.s32 %v2232, %v2234
        %v2236 = vrot.slane %v2222, %v2235
        %v2237 = vcombine.low %v2136, %v2144
        %v2238 = vcombine.high %v2136, %v2144
        %v2240 = vunpack.c.l.s4 1983009808
        %v2241 = vunpack.c.0.s8 %v2240
        %v2242 = vlaneseq
        %v2243 = vshrl.u32 %v2242, 7
        %v2244 = vsub.s32 %v2241, %v2243
        %v2245 = vrot.slane %v2237, %v2244
        %v2247 = vunpack.c.l.s4 1983009808
        %v2248 = vunpack.c.0.s8 %v2247
        %v2249 = vlaneseq
        %v2250 = vshrl.u32 %v2249, 7
        %v2251 = vsub.s32 %v2248, %v2250
        %v2252 = vrot.slane %v2238, %v2251
        %v2253 = vcombine.low %v2229, %v2245
        %v2254 = vcombine.high %v2229, %v2245
        %v2256 = vunpack.c.l.s4 1934713408
        %v2257 = vunpack.c.0.s8 %v2256
        %v2258 = vlaneseq
        %v2259 = vshrl.u32 %v2258, 7
        %v2260 = vsub.s32 %v2257, %v2259
        %v2261 = vrot.slane %v2253, %v2260
        %v2263 = vunpack.c.l.s4 1934713408
        %v2264 = vunpack.c.0.s8 %v2263
        %v2265 = vlaneseq
        %v2266 = vshrl.u32 %v2265, 7
        %v2267 = vsub.s32 %v2264, %v2266
        %v2268 = vrot.slane %v2254, %v2267
        %v2269 = vcombine.low %v2236, %v2252
        %v2270 = vcombine.high %v2236, %v2252
        %v2272 = vunpack.c.l.s4 1934713408
        %v2273 = vunpack.c.0.s8 %v2272
        %v2274 = vlaneseq
        %v2275 = vshrl.u32 %v2274, 7
        %v2276 = vsub.s32 %v2273, %v2275
        %v2277 = vrot.slane %v2269, %v2276
        %v2279 = vunpack.c.l.s4 1934713408
        %v2280 = vunpack.c.0.s8 %v2279
        %v2281 = vlaneseq
        %v2282 = vshrl.u32 %v2281, 7
        %v2283 = vsub.s32 %v2280, %v2282
        %v2284 = vrot.slane %v2270, %v2283
        %v2285 = vcombine.high %v2261, 0.0
        %v2286 = vcombine.high %v2268, 0.0
        %v2287 = vcombine.high %v2277, 0.0
        %v2288 = vcombine.high %v2284, 0.0
        %2290 = vrot.lane.b32.xlu0 %v2217, 16
        %v2291 = vpop.permute.xlu0 %2290
        %2294 = vrot.lane.b32.xlu0 %v2200, 32
        %v2295 = vpop.permute.xlu0 %2294
        %2298 = vrot.lane.b32.xlu0 %v2218, 48
        %v2299 = vpop.permute.xlu0 %2298
        %2302 = vrot.lane.b32.xlu0 %v2209, 64
        %v2303 = vpop.permute.xlu0 %2302
        %2306 = vrot.lane.b32.xlu0 %v2219, 80
        %v2307 = vpop.permute.xlu0 %2306
        %2310 = vrot.lane.b32.xlu0 %v2216, 96
        %v2311 = vpop.permute.xlu0 %2310
        %2314 = vrot.lane.b32.xlu0 %v2220, 112
        %v2315 = vpop.permute.xlu0 %2314
        %2318 = vrot.lane.b32.xlu0 %v2285, 16
        %v2319 = vpop.permute.xlu0 %2318
        %2322 = vrot.lane.b32.xlu0 %v2268, 32
        %v2323 = vpop.permute.xlu0 %2322
        %2326 = vrot.lane.b32.xlu0 %v2286, 48
        %v2327 = vpop.permute.xlu0 %2326
        %2330 = vrot.lane.b32.xlu0 %v2277, 64
        %v2331 = vpop.permute.xlu0 %2330
        %2334 = vrot.lane.b32.xlu0 %v2287, 80
        %v2335 = vpop.permute.xlu0 %2334
        %2338 = vrot.lane.b32.xlu0 %v2284, 96
        %v2339 = vpop.permute.xlu0 %2338
        %2342 = vrot.lane.b32.xlu0 %v2288, 112
        %v2343 = vpop.permute.xlu0 %2342
        %v2345 = vsel %vm480, %v2193, %v2291
        %v2346 = vsel %vm482, %v2345, %v2295
        %v2347 = vsel %vm484, %v2346, %v2299
        %v2348 = vsel %vm486, %v2347, %v2303
        %v2349 = vsel %vm488, %v2348, %v2307
        %v2350 = vsel %vm490, %v2349, %v2311
        %v2351 = vsel %vm492, %v2350, %v2315
        %v2352 = vsel %vm480, %v2261, %v2319
        %v2353 = vsel %vm482, %v2352, %v2323
        %v2354 = vsel %vm484, %v2353, %v2327
        %v2355 = vsel %vm486, %v2354, %v2331
        %v2356 = vsel %vm488, %v2355, %v2335
        %v2357 = vsel %vm490, %v2356, %v2339
        %v2358 = vsel %vm492, %v2357, %v2343
        %v2361 = vrot.slane %v727, 4
        %v2362 = vrot.slane %v734, 4
        %v2367 = vrot.slane %v1196, 4
        %v2368 = vrot.slane %v1203, 4
        %v2373 = vrot.slane %v1656, 4
        %v2374 = vrot.slane %v1663, 4
        %v2379 = vrot.slane %v2121, 4
        %v2380 = vrot.slane %v2128, 4
        %vm2383 = vcmask 1043456
        %v2384 = vsel %vm2383, %v493, %v2361
        %v2385 = vsel %vm2383, %v500, %v2362
        %v2386 = vsel %vm2383, %v957, %v2367
        %v2387 = vsel %vm2383, %v964, %v2368
        %v2388 = vsel %vm2383, %v1426, %v2373
        %v2389 = vsel %vm2383, %v1433, %v2374
        %v2390 = vsel %vm2383, %v1891, %v2379
        %v2391 = vsel %vm2383, %v1898, %v2380
        %v2392 = vld [vmem:[%s1] sm:$0xf]
        %v2393 = vld [vmem:[%s2] sm:$0xf]
        %2395 = vset.pattern.permute.xlu0 0
        %2396 = vperm.xlu0 %2395, %v2393
        %v2397 = vpop.permute.xlu0 %2396
        %vm2399 = vcmask 293888
        %v2401 = vsel %vm2399, %v2392, 0
        %v2404 = vsel %vm2383, %v2351, 0
        %v2407 = vsel %vm2383, %v2358, 0
        %2409 = vmatprep.subr.mxu0 0.0
        %2410 = vmatpush1.msra.mxu0 0.0
        %2411 = vmatprep.subr.mxu0 0.0
        %2412 = vmatpush1.msra.mxu0 0.0
        %2413 = vmatprep.subr.mxu0 0.0
        %2414 = vmatpush1.msra.mxu0 0.0
        %2415 = vmatprep.subr.mxu0 0.0
        %2416 = vmatpush1.msra.mxu0 0.0
        %2417 = vmatprep.subr.mxu0 0.0
        %2418 = vmatpush1.msra.mxu0 0.0
        %2419 = vmatprep.subr.mxu0 0.0
        %2420 = vmatpush1.msra.mxu0 0.0
        %2421 = vmatprep.subr.mxu0 0.0
        %2422 = vmatpush1.msra.mxu0 0.0
        %2423 = vmatprep.subr.mxu0 0.0
        %2424 = vmatpush1.msra.mxu0 0.0
        %2425 = vmatprep.subr.mxu0 0.0
        %2426 = vmatpush1.msra.mxu0 0.0
        %2427 = vmatprep.subr.mxu0 0.0
        %2428 = vmatpush1.msra.mxu0 0.0
        %2429 = vmatprep.subr.mxu0 0.0
        %2430 = vmatpush1.msra.mxu0 0.0
        %2431 = vmatprep.subr.mxu0 %v2407
        %2432 = vmatpush1.msra.mxu0 %v2404
        %2433 = vmatprep.subr.mxu0 %v2391
        %2434 = vmatpush1.msra.mxu0 %v2390
        %2435 = vmatprep.subr.mxu0 %v2389
        %2436 = vmatpush1.msra.mxu0 %v2388
        %2437 = vmatprep.subr.mxu0 %v2387
        %2438 = vmatpush1.msra.mxu0 %v2386
        %2439 = vmatprep.subr.mxu0 %v2385
        %2440 = vmatpush1.msra.mxu0 %v2384
        %2441 = vmatprep.subr.mxu0 0.0
        %2442 = vmatpush2.msra.mxu0 0.0
        %2443 = vmatprep.subr.mxu0 0.0
        %2444 = vmatpush2.msra.mxu0 0.0
        %2445 = vmatprep.subr.mxu0 0.0
        %2446 = vmatpush2.msra.mxu0 0.0
        %2447 = vmatprep.subr.mxu0 0.0
        %2448 = vmatpush2.msra.mxu0 0.0
        %2449 = vmatprep.subr.mxu0 0.0
        %2450 = vmatpush2.msra.mxu0 0.0
        %2451 = vmatprep.subr.mxu0 0.0
        %2452 = vmatpush2.msra.mxu0 0.0
        %2453 = vmatprep.subr.mxu0 0.0
        %2454 = vmatpush2.msra.mxu0 0.0
        %2455 = vmatprep.subr.mxu0 0.0
        %2456 = vmatpush2.msra.mxu0 0.0
        %2457 = vmatprep.subr.mxu0 0.0
        %2458 = vmatpush2.msra.mxu0 0.0
        %2459 = vmatprep.subr.mxu0 0.0
        %2460 = vmatpush2.msra.mxu0 0.0
        %2461 = vmatprep.subr.mxu0 0.0
        %2462 = vmatpush2.msra.mxu0 0.0
        %2463 = vmatprep.subr.mxu0 0.0
        %2464 = vmatpush2.msra.mxu0 0.0
        %2465 = vmatprep.subr.mxu0 0.0
        %2466 = vmatpush2.msra.mxu0 0.0
        %2467 = vmatprep.subr.mxu0 0.0
        %2468 = vmatpush2.msra.mxu0 0.0
        %2469 = vmatprep.subr.mxu0 0.0
        %2470 = vmatpush2.msra.mxu0 0.0
        %2471 = vmatprep.subr.mxu0 0.0
        %2472 = vmatpush2.msra.mxu0 0.0
        %2473 = vmatprep.mubr.f32.mxu0 0.0
        %2474 = vmatmul.mubr.f32.gmra.mxu0 %v2401
        %v2475 = vpop.f32.mrf.mxu0
        %v2476 = vadd.f32 %v2397, %v2475
        %v2477 = vpop.f32.mrf.mxu0
        %v2478 = vadd.f32 %v2397, %v2477
        %2479 = vdwg.mxu0
        %v2482 = vcombine.low %v2476, %v2478
        %2484 = vst [vmem:[%s188] sm:$0xff] %v2482
        %s2485 = sand.u32 %s96, 1
        %s2486 = scalar_lea.sflag [#allocation4], %s2485
        %s2487 = sand.u32 %s96, 1
        %s2488 = smul.addr %s2487, 8
        %s2489 = scalar_lea.vmem [#allocation5], %s2488
        // Predicated region
        $region37: #{tpu_custom_call.1} parent=31 // pred_check
          %p2490 = pneg %p106
        $region38: #{tpu_custom_call.1} parent=31 // pred_check_branch
          %2492 = sbr.rel (%p2490) target = $region40
        $region39: #{tpu_custom_call.1} parent=31 // pred_region
          %s2494 = ssub.s32 128, 128
          %2495 = vsyncadd %s2486, %s2494
          %s2496 = smul.addr %s20, 2
          %s2497 = smul.addr %s2496, 64
          %s2498 = scalar_lea.hbm %s3, %s2497
          %s2500 = sshll.u32 %s2489, 4
          %s2501 = int_to_ptr.vmem [resolvable:$true] %s2500
          %2503 = dma.vmem_to_hbm [thread:$0]  %s2501, 128, %s2498, %s2486
        $region40: #{tpu_custom_call.1} parent=31 // pred_fallthru
          _
      $region32: #{tpu_custom_call.1} parent=5 // pred_fallthru
        _
      %p2504 = scmp.le.s32.totalorder 2, %s15
      // Predicated region
      $region41: #{tpu_custom_call.1} parent=5 // pred_check
        %p2505 = pneg %p2504
      $region42: #{tpu_custom_call.1} parent=5 // pred_check_branch
        %2507 = sbr.rel (%p2505) target = $region44
      $region43: #{tpu_custom_call.1} parent=5 // pred_region
        %s2508 = ssub.s32 %s15, 2
        // Predicated region
        $region45: #{tpu_custom_call.1} parent=43 // pred_check
          %p2509 = pneg %p112
        $region46: #{tpu_custom_call.1} parent=43 // pred_check_branch
          %2511 = sbr.rel (%p2509) target = $region48
        $region47: #{tpu_custom_call.1} parent=43 // pred_region
          %s2512 = sand.u32 %s97, 1
          %s2513 = scalar_lea.sflag [#allocation4], %s2512
          %s2514 = sand.u32 %s97, 1
          %s2515 = smul.addr %s2514, 8
          %s2516 = scalar_lea.vmem [#allocation5], %s2515
          %2517 = dma.done %s2513, 128
        $region48: #{tpu_custom_call.1} parent=43 // pred_fallthru
          _
      $region44: #{tpu_custom_call.1} parent=5 // pred_fallthru
        _
    $region6: #{tpu_custom_call.1} parent=1 // loop_footer
      %s19 = sadd.s32 1, %s15
    $region7: #{tpu_custom_call.1} parent=1 // loop_footer_branch
      %14 = sbr.rel target = $region3
    $region8: #{tpu_custom_call.1} parent=1 // loop_exit
      _
    %2518 = vsyncpa [#allocation3], 1
    %s2519 = scalar_lea.sflag [#allocation3], 1
    %2520 = vsyncpa %s2519, 1
    %2521 = vsyncpa [#allocation4], 1
    %s2522 = scalar_lea.sflag [#allocation4], 1
    %2523 = vsyncpa %s2522, 1

</llo_original>
